<compile_context>
chip_gen: v5e
topology: v5e:2x2
jax: 0.10.0
libtpu: 0.0.40
codegen_flags: <defaults>
</compile_context>

<pallas_src>
import jax
import jax.numpy as jnp
from jax.experimental import pallas as pl
from jax.experimental.pallas import tpu as pltpu


def zslg_kernel(z_ref, c_ref, w1z_ref, wc_ref, b1_ref, w2_ref, b2_ref, out_ref):
    # First main layer on the (virtual) concat [z, rdc_text], with the
    # rdc_text projection pre-folded into wc_ref (= Wr @ W1r) and b1_ref.
    a = (jnp.dot(z_ref[...], w1z_ref[...], preferred_element_type=jnp.float32)
         + jnp.dot(c_ref[...], wc_ref[...], preferred_element_type=jnp.float32)
         + b1_ref[...])

    # LeakyReLU (PyTorch default negative_slope = 0.01)
    a = jnp.where(a >= 0, a, 0.01 * a)

    # Second main layer + Tanh (bf16 operands on the MXU, f32 accumulation)
    o = jnp.tanh(jnp.dot(a.astype(w2_ref.dtype), w2_ref[...],
                         preferred_element_type=jnp.float32) + b2_ref[...])
    out_ref[...] = o.astype(out_ref.dtype)


def _round_up(x, m):
    return ((x + m - 1) // m) * m


def zslg_forward(c, z, params, *, block_b=256, compute_dtype=jnp.bfloat16):
    """Run the fused ZSLG forward Pallas kernel.

    c: (B, in_dim), z: (B, z_dim); returns (B, out_dim) float32.
    """
    wr, br, w1z, w1r, b1, w2, b2 = params
    B, in_dim = c.shape
    z_dim = z.shape[1]
    h_dim = w2.shape[0]
    out_dim = w2.shape[1]

    # Host-side algebraic fold (done once, in f32).
    wc = wr @ w1r                  # (in_dim, h_dim)
    b1f = b1 + br @ w1r            # (1, h_dim)

    # bf16 streaming for the bandwidth-heavy operands; biases stay f32.
    c_s = c.astype(compute_dtype)
    z_s = z.astype(compute_dtype)
    w1z_s = w1z.astype(compute_dtype)
    wc_s = wc.astype(compute_dtype)
    w2_s = w2.astype(compute_dtype)
    b1_f32 = b1f.astype(jnp.float32)
    b2_f32 = b2.astype(jnp.float32)

    # Batch tiling: pad rows so the grid divides evenly (padded rows are
    # sliced off after the call).
    tb = block_b
    if B < tb:
        tb = max(8, _round_up(B, 8))
    Bp = _round_up(B, tb)
    if Bp != B:
        pad = Bp - B
        c_s = jnp.pad(c_s, ((0, pad), (0, 0)))
        z_s = jnp.pad(z_s, ((0, pad), (0, 0)))

    grid = (Bp // tb,)

    out = pl.pallas_call(
        zslg_kernel,
        out_shape=jax.ShapeDtypeStruct((Bp, out_dim), jnp.float32),
        grid=grid,
        in_specs=[
            pl.BlockSpec((tb, z_dim), lambda i: (i, 0)),       # z   (row-tiled)
            pl.BlockSpec((tb, in_dim), lambda i: (i, 0)),      # c   (row-tiled)
            pl.BlockSpec((z_dim, h_dim), lambda i: (0, 0)),    # W1z (resident)
            pl.BlockSpec((in_dim, h_dim), lambda i: (0, 0)),   # Wr@W1r (resident)
            pl.BlockSpec((1, h_dim), lambda i: (0, 0)),        # b1' (resident)
            pl.BlockSpec((h_dim, out_dim), lambda i: (0, 0)),  # W2  (resident)
            pl.BlockSpec((1, out_dim), lambda i: (0, 0)),      # b2  (resident)
        ],
        out_specs=pl.BlockSpec((tb, out_dim), lambda i: (i, 0)),
        compiler_params=pltpu.CompilerParams(
            dimension_semantics=("parallel",)),   # megacore sharding on v7x
    )(z_s, c_s, w1z_s, wc_s, b1_f32, w2_s, b2_f32)

    return out[:B] if Bp != B else out


def init_params(key, in_dim, rdc_text_dim, z_dim, h_dim, out_dim):
    """Deterministic synthetic parameter init (Linear-like uniform), f32."""
    ks = jax.random.split(key, 7)

    def uni(k, shape, fan_in):
        bound = 1.0 / jnp.sqrt(fan_in)
        return jax.random.uniform(k, shape, jnp.float32, -bound, bound)

    # rdc_text: Linear(in_dim, rdc_text_dim)  (stored transposed: (in, out))
    wr = uni(ks[0], (in_dim, rdc_text_dim), in_dim)
    br = uni(ks[1], (1, rdc_text_dim), in_dim)
    # main[0]: Linear(z_dim + rdc_text_dim, h_dim), split into z / rdc rows
    fan1 = z_dim + rdc_text_dim
    w1z = uni(ks[2], (z_dim, h_dim), fan1)
    w1r = uni(ks[3], (rdc_text_dim, h_dim), fan1)
    b1 = uni(ks[4], (1, h_dim), fan1)
    # main[2]: Linear(h_dim, out_dim)
    w2 = uni(ks[5], (h_dim, out_dim), h_dim)
    b2 = uni(ks[6], (1, out_dim), h_dim)
    return (wr, br, w1z, w1r, b1, w2, b2)


def zslg_reference(c, z, params):
    """Pure-JAX f32 reference matching the PyTorch module exactly."""
    wr, br, w1z, w1r, b1, w2, b2 = params
    rdc = c @ wr + br
    x = jnp.concatenate([z, rdc], axis=1)
    w1 = jnp.concatenate([w1z, w1r], axis=0)
    a = x @ w1 + b1
    a = jnp.where(a >= 0, a, 0.01 * a)
    return jnp.tanh(a @ w2 + b2)


if __name__ == "__main__":
    # Small shapes consistent with the module defaults (scaled down hidden
    # sizes); B is deliberately not a multiple of the batch tile to exercise
    # the padding path and a 2-step grid.
    B = 384
    in_dim = 256
    out_dim = 256
    z_dim = 32
    h_dim = 64
    rdc_text_dim = 32

    key = jax.random.PRNGKey(0)
    k_c, k_z, k_p = jax.random.split(key, 3)

    c = jax.random.normal(k_c, (B, in_dim), jnp.float32)
    # z defaults to standard normal noise in the PyTorch forward; generated
    # deterministically here and passed explicitly.
    z = jax.random.normal(k_z, (B, z_dim), jnp.float32)

    params = init_params(k_p, in_dim, rdc_text_dim, z_dim, h_dim, out_dim)

    out = zslg_forward(c, z, params)
    out = jax.block_until_ready(out)

    ref = zslg_reference(c, z, params)
    assert out.shape == (B, out_dim)
    # bf16 streaming + the Wr@W1r fold loosen numerics slightly vs the pure
    # f32 reference; tolerance relaxed accordingly (outputs are tanh-bounded).
    assert jnp.allclose(out, ref, atol=2e-2, rtol=1e-2), "mismatch vs reference"

    print("KERNEL_OK")
</pallas_src>

<mosaic_0001>
module attributes {stable_mosaic.version = 11 : i64} {
  func.func @zslg_kernel(%arg0: i32, %arg1: memref<256x32xbf16, #tpu.memory_space<vmem>>, %arg2: memref<256x256xbf16, #tpu.memory_space<vmem>>, %arg3: memref<32x64xbf16, #tpu.memory_space<vmem>>, %arg4: memref<256x64xbf16, #tpu.memory_space<vmem>>, %arg5: memref<1x64xf32, #tpu.memory_space<vmem>>, %arg6: memref<64x256xbf16, #tpu.memory_space<vmem>>, %arg7: memref<1x256xf32, #tpu.memory_space<vmem>>, %arg8: memref<256x256xf32, #tpu.memory_space<vmem>>) attributes {dimension_semantics = [#tpu.dimension_semantics<parallel>], iteration_bounds = array<i64: 2>, scalar_prefetch = 0 : i64, scratch_operands = 0 : i64, tpu.core_type = #tpu.core_type<tc>, window_params = [{transform_indices = @transform_0, window_bounds = array<i64: 256, 32>}, {transform_indices = @transform_1, window_bounds = array<i64: 256, 256>}, {pipeline_mode = #tpu.pipeline_mode<synchronous>, transform_indices = @transform_2, window_bounds = array<i64: 32, 64>}, {pipeline_mode = #tpu.pipeline_mode<synchronous>, transform_indices = @transform_3, window_bounds = array<i64: 256, 64>}, {pipeline_mode = #tpu.pipeline_mode<synchronous>, transform_indices = @transform_4, window_bounds = array<i64: 1, 64>}, {pipeline_mode = #tpu.pipeline_mode<synchronous>, transform_indices = @transform_5, window_bounds = array<i64: 64, 256>}, {pipeline_mode = #tpu.pipeline_mode<synchronous>, transform_indices = @transform_6, window_bounds = array<i64: 1, 256>}, {transform_indices = @transform_7, window_bounds = array<i64: 256, 256>}]} {
    %c0 = arith.constant 0 : index
    %c0_0 = arith.constant 0 : index
    %0 = vector.load %arg1[%c0, %c0_0] : memref<256x32xbf16, #tpu.memory_space<vmem>>, vector<256x32xbf16>
    %c0_1 = arith.constant 0 : index
    %c0_2 = arith.constant 0 : index
    %1 = vector.load %arg3[%c0_1, %c0_2] : memref<32x64xbf16, #tpu.memory_space<vmem>>, vector<32x64xbf16>
    %cst = arith.constant dense<0.000000e+00> : vector<256x64xf32>
    %2 = tpu.matmul %0, %1, %cst {dimension_numbers = #tpu.dot_dimension_numbers<[1], [0], [0], [1], [0, 0, 1, 1], [], []>} : vector<256x32xbf16>, vector<32x64xbf16>, vector<256x64xf32> -> vector<256x64xf32>
    %c0_3 = arith.constant 0 : index
    %c0_4 = arith.constant 0 : index
    %3 = vector.load %arg2[%c0_3, %c0_4] : memref<256x256xbf16, #tpu.memory_space<vmem>>, vector<256x256xbf16>
    %c0_5 = arith.constant 0 : index
    %c0_6 = arith.constant 0 : index
    %4 = vector.load %arg4[%c0_5, %c0_6] : memref<256x64xbf16, #tpu.memory_space<vmem>>, vector<256x64xbf16>
    %cst_7 = arith.constant dense<0.000000e+00> : vector<256x64xf32>
    %5 = tpu.matmul %3, %4, %cst_7 {dimension_numbers = #tpu.dot_dimension_numbers<[1], [0], [0], [1], [0, 0, 1, 1], [], []>} : vector<256x256xbf16>, vector<256x64xbf16>, vector<256x64xf32> -> vector<256x64xf32>
    %6 = arith.addf %2, %5 : vector<256x64xf32>
    %c0_8 = arith.constant 0 : index
    %c0_9 = arith.constant 0 : index
    %7 = vector.load %arg5[%c0_8, %c0_9] : memref<1x64xf32, #tpu.memory_space<vmem>>, vector<1x64xf32>
    %8 = vector.broadcast %7 : vector<1x64xf32> to vector<256x64xf32>
    %9 = arith.addf %6, %8 : vector<256x64xf32>
    %cst_10 = arith.constant 0.000000e+00 : f32
    %10 = vector.broadcast %cst_10 : f32 to vector<256x64xf32>
    %11 = arith.cmpf oge, %9, %10 : vector<256x64xf32>
    %cst_11 = arith.constant 0.00999999977 : f32
    %12 = vector.broadcast %cst_11 : f32 to vector<256x64xf32>
    %13 = arith.mulf %12, %9 : vector<256x64xf32>
    %14 = arith.select %11, %9, %13 : vector<256x64xi1>, vector<256x64xf32>
    %15 = arith.truncf %14 : vector<256x64xf32> to vector<256x64xbf16>
    %c0_12 = arith.constant 0 : index
    %c0_13 = arith.constant 0 : index
    %16 = vector.load %arg6[%c0_12, %c0_13] : memref<64x256xbf16, #tpu.memory_space<vmem>>, vector<64x256xbf16>
    %cst_14 = arith.constant dense<0.000000e+00> : vector<256x256xf32>
    %17 = tpu.matmul %15, %16, %cst_14 {dimension_numbers = #tpu.dot_dimension_numbers<[1], [0], [0], [1], [0, 0, 1, 1], [], []>} : vector<256x64xbf16>, vector<64x256xbf16>, vector<256x256xf32> -> vector<256x256xf32>
    %c0_15 = arith.constant 0 : index
    %c0_16 = arith.constant 0 : index
    %18 = vector.load %arg7[%c0_15, %c0_16] : memref<1x256xf32, #tpu.memory_space<vmem>>, vector<1x256xf32>
    %19 = vector.broadcast %18 : vector<1x256xf32> to vector<256x256xf32>
    %20 = arith.addf %17, %19 : vector<256x256xf32>
    %21 = math.tanh %20 : vector<256x256xf32>
    %c0_17 = arith.constant 0 : index
    %c0_18 = arith.constant 0 : index
    %22 = vector.load %arg8[%c0_17, %c0_18] : memref<256x256xf32, #tpu.memory_space<vmem>>, vector<256x256xf32>
    tpu.vector_store %arg8[%c0_17, %c0_18], %21 {strides = array<i32>} : memref<256x256xf32, #tpu.memory_space<vmem>>, vector<256x256xf32>,
    return
  }
  func.func @transform_0(%arg0: i32) -> (i32, i32) {
    %c0_i32 = arith.constant 0 : i32
    %c0_i32_0 = arith.constant 0 : i32
    return %arg0, %c0_i32 : i32, i32
  }
  func.func @transform_1(%arg0: i32) -> (i32, i32) {
    %c0_i32 = arith.constant 0 : i32
    %c0_i32_0 = arith.constant 0 : i32
    return %arg0, %c0_i32 : i32, i32
  }
  func.func @transform_2(%arg0: i32) -> (i32, i32) {
    %c0_i32 = arith.constant 0 : i32
    %c0_i32_0 = arith.constant 0 : i32
    %c0_i32_1 = arith.constant 0 : i32
    return %c0_i32, %c0_i32_0 : i32, i32
  }
  func.func @transform_3(%arg0: i32) -> (i32, i32) {
    %c0_i32 = arith.constant 0 : i32
    %c0_i32_0 = arith.constant 0 : i32
    %c0_i32_1 = arith.constant 0 : i32
    return %c0_i32, %c0_i32_0 : i32, i32
  }
  func.func @transform_4(%arg0: i32) -> (i32, i32) {
    %c0_i32 = arith.constant 0 : i32
    %c0_i32_0 = arith.constant 0 : i32
    %c0_i32_1 = arith.constant 0 : i32
    return %c0_i32, %c0_i32_0 : i32, i32
  }
  func.func @transform_5(%arg0: i32) -> (i32, i32) {
    %c0_i32 = arith.constant 0 : i32
    %c0_i32_0 = arith.constant 0 : i32
    %c0_i32_1 = arith.constant 0 : i32
    return %c0_i32, %c0_i32_0 : i32, i32
  }
  func.func @transform_6(%arg0: i32) -> (i32, i32) {
    %c0_i32 = arith.constant 0 : i32
    %c0_i32_0 = arith.constant 0 : i32
    %c0_i32_1 = arith.constant 0 : i32
    return %c0_i32, %c0_i32_0 : i32, i32
  }
  func.func @transform_7(%arg0: i32) -> (i32, i32) {
    %c0_i32 = arith.constant 0 : i32
    %c0_i32_0 = arith.constant 0 : i32
    return %arg0, %c0_i32 : i32, i32
  }
}

</mosaic_0001>

<llo_original>
// kernel: tpu_custom_call.1
$region0: #{tpu_custom_call.1}
  #allocation0 [shape = 'u32[]', space=smem, size = 0x4, offset = 0x4, fixed_abs, tag = 'smem constant byte address 0x4 - core index']
  #allocation1 [shape = 'u32[72,128]{1,0:T(1,128)}', space=vmem, size = 0x9000, scoped, tag = 'internal scratch']
  %s0 = inlined_call_operand.vmem [shape: bf16[512,32], index: 0, kind: input, shape index: {}]
  %s1 = inlined_call_operand.hbm [shape: bf16[512,256], index: 1, kind: input, shape index: {}]
  %s2 = inlined_call_operand.vmem [shape: bf16[32,64], index: 2, kind: input, shape index: {}]
  %s3 = inlined_call_operand.vmem [shape: bf16[256,64], index: 3, kind: input, shape index: {}]
  %s4 = inlined_call_operand.vmem [shape: f32[1,64], index: 4, kind: input, shape index: {}]
  %s5 = inlined_call_operand.vmem [shape: bf16[64,256], index: 5, kind: input, shape index: {}]
  %s6 = inlined_call_operand.vmem [shape: f32[1,256], index: 6, kind: input, shape index: {}]
  %s7 = inlined_call_operand.hbm [shape: f32[512,256], index: 7, kind: output, shape index: {}]
  %s8 = sld [smem:[#allocation0]]
  $region65: #{tpu_custom_call.1} parent=0
    _
  %s10 = ssub.s32 1, %s8
  %s11 = scalar_select 0, %s10, %s8
  $region1: #{tpu_custom_call.1} parent=0
    #allocation2 [shape = 'u8[262144]{0}', space=vmem, size = 0x40000, scoped, tag = 'input window, operand 1']
    #allocation3 [shape = 's32[2]{0}', space=sflag, size = 0x8, scoped, tag = 'scoped memory for tpu_custom_call.1']
    #allocation4 [shape = 's32[2]{0}', space=sflag, size = 0x8, scoped, tag = 'scoped memory for tpu_custom_call.1']
    #allocation5 [shape = 'u8[524288]{0}', space=vmem, size = 0x80000, scoped, tag = 'output window, operand 0']
    %12 = vsyncpa [#allocation3], 0
    %s13 = scalar_lea.sflag [#allocation3], 1
    %14 = vsyncpa %s13, 0
    %15 = vsyncpa [#allocation4], 0
    %s16 = scalar_lea.sflag [#allocation4], 1
    %17 = vsyncpa %s16, 0
    loop: start=0, step=1, limit=4
    $region2: #{tpu_custom_call.1} parent=1 // loop_pre_header
      _
    $region3: #{tpu_custom_call.1} parent=1 // loop_header
      %s19 = sphi 0, %s23
      %p20 = scmp.ge.s32.totalorder %s19, 4
      %s29 = sphi 0, %s31
      %s32 = sphi 0, %s29
      %s33 = sphi 0, %s32
      %s49 = sphi 0, %s33
      %s55 = sphi 0, %s57
      %s58 = sphi 0, %s55
      %s59 = sphi 0, %s58
      %s75 = sphi 0, %s59
      %s79 = sphi 0, %s79
      %s81 = sphi 0, %s79
      %s82 = sphi 0, %s81
      %s96 = sphi 0, %s82
      %s100 = sphi 0, %s100
      %s102 = sphi 0, %s100
      %s103 = sphi 0, %s102
      %s117 = sphi 0, %s103
      %s121 = sphi 0, %s121
      %s123 = sphi 0, %s121
      %s124 = sphi 0, %s123
      %s138 = sphi 0, %s124
      %s142 = sphi 0, %s142
      %s144 = sphi 0, %s142
      %s145 = sphi 0, %s144
      %s159 = sphi 0, %s145
      %s163 = sphi 0, %s163
      %s165 = sphi 0, %s163
      %s166 = sphi 0, %s165
      %s180 = sphi 0, %s166
      %s186 = sphi 0, %s188
      %s189 = sphi 0, %s186
      %s190 = sphi 0, %s189
      %s206 = sphi 0, %s190
    $region4: #{tpu_custom_call.1} parent=1 // loop_header_branch
      %22 = sbr.rel (%p20) target = $region8
    $region5: #{tpu_custom_call.1} parent=1 // loop_body
      %s24 = ssub.s32 %s19, 1
      %s25 = ssub.s32 %s19, 2
      %s26 = sadd.s32 %s19, 1
      %s27 = ssub.s32 %s19, %s26
      %p28 = scmp.eq.s32.totalorder %s27, 0
      %s30 = sadd.s32 %s29, 1
      %s31 = scalar_select %p28, %s29, %s30
      %p34 = pneg %p28
      %p35 = scmp.eq.s32.totalorder %s19, 1
      %p36 = por %p34, %p35
      %p37 = scmp.ne.s32.totalorder %s29, %s32
      %p38 = scmp.eq.s32.totalorder %s19, 0
      %p39 = por %p37, %p38
      %p40 = scmp.ne.s32.totalorder %s29, %s32
      %p41 = scmp.eq.s32.totalorder %s24, 1
      %p42 = por %p40, %p41
      %p43 = scmp.ne.s32.totalorder %s32, %s33
      %p44 = scmp.eq.s32.totalorder %s24, 0
      %p45 = por %p43, %p44
      %p46 = scmp.ne.s32.totalorder %s32, %s33
      %p47 = scmp.eq.s32.totalorder %s25, 1
      %p48 = por %p46, %p47
      %p50 = scmp.ne.s32.totalorder %s33, %s49
      %p51 = scmp.eq.s32.totalorder %s25, 0
      %p52 = por %p50, %p51
      %s53 = ssub.s32 %s19, %s26
      %p54 = scmp.eq.s32.totalorder %s53, 0
      %s56 = sadd.s32 %s55, 1
      %s57 = scalar_select %p54, %s55, %s56
      %p60 = pneg %p54
      %p61 = scmp.eq.s32.totalorder %s19, 1
      %p62 = por %p60, %p61
      %p63 = scmp.ne.s32.totalorder %s55, %s58
      %p64 = scmp.eq.s32.totalorder %s19, 0
      %p65 = por %p63, %p64
      %p66 = scmp.ne.s32.totalorder %s55, %s58
      %p67 = scmp.eq.s32.totalorder %s24, 1
      %p68 = por %p66, %p67
      %p69 = scmp.ne.s32.totalorder %s58, %s59
      %p70 = scmp.eq.s32.totalorder %s24, 0
      %p71 = por %p69, %p70
      %p72 = scmp.ne.s32.totalorder %s58, %s59
      %p73 = scmp.eq.s32.totalorder %s25, 1
      %p74 = por %p72, %p73
      %p76 = scmp.ne.s32.totalorder %s59, %s75
      %p77 = scmp.eq.s32.totalorder %s25, 0
      %p78 = por %p76, %p77
      %s80 = sadd.s32 %s79, 1
      %p83 = scmp.eq.s32.totalorder %s19, 1
      %p84 = scmp.ne.s32.totalorder %s79, %s81
      %p85 = scmp.eq.s32.totalorder %s19, 0
      %p86 = por %p84, %p85
      %p87 = scmp.ne.s32.totalorder %s79, %s81
      %p88 = scmp.eq.s32.totalorder %s24, 1
      %p89 = por %p87, %p88
      %p90 = scmp.ne.s32.totalorder %s81, %s82
      %p91 = scmp.eq.s32.totalorder %s24, 0
      %p92 = por %p90, %p91
      %p93 = scmp.ne.s32.totalorder %s81, %s82
      %p94 = scmp.eq.s32.totalorder %s25, 1
      %p95 = por %p93, %p94
      %p97 = scmp.ne.s32.totalorder %s82, %s96
      %p98 = scmp.eq.s32.totalorder %s25, 0
      %p99 = por %p97, %p98
      %s101 = sadd.s32 %s100, 1
      %p104 = scmp.eq.s32.totalorder %s19, 1
      %p105 = scmp.ne.s32.totalorder %s100, %s102
      %p106 = scmp.eq.s32.totalorder %s19, 0
      %p107 = por %p105, %p106
      %p108 = scmp.ne.s32.totalorder %s100, %s102
      %p109 = scmp.eq.s32.totalorder %s24, 1
      %p110 = por %p108, %p109
      %p111 = scmp.ne.s32.totalorder %s102, %s103
      %p112 = scmp.eq.s32.totalorder %s24, 0
      %p113 = por %p111, %p112
      %p114 = scmp.ne.s32.totalorder %s102, %s103
      %p115 = scmp.eq.s32.totalorder %s25, 1
      %p116 = por %p114, %p115
      %p118 = scmp.ne.s32.totalorder %s103, %s117
      %p119 = scmp.eq.s32.totalorder %s25, 0
      %p120 = por %p118, %p119
      %s122 = sadd.s32 %s121, 1
      %p125 = scmp.eq.s32.totalorder %s19, 1
      %p126 = scmp.ne.s32.totalorder %s121, %s123
      %p127 = scmp.eq.s32.totalorder %s19, 0
      %p128 = por %p126, %p127
      %p129 = scmp.ne.s32.totalorder %s121, %s123
      %p130 = scmp.eq.s32.totalorder %s24, 1
      %p131 = por %p129, %p130
      %p132 = scmp.ne.s32.totalorder %s123, %s124
      %p133 = scmp.eq.s32.totalorder %s24, 0
      %p134 = por %p132, %p133
      %p135 = scmp.ne.s32.totalorder %s123, %s124
      %p136 = scmp.eq.s32.totalorder %s25, 1
      %p137 = por %p135, %p136
      %p139 = scmp.ne.s32.totalorder %s124, %s138
      %p140 = scmp.eq.s32.totalorder %s25, 0
      %p141 = por %p139, %p140
      %s143 = sadd.s32 %s142, 1
      %p146 = scmp.eq.s32.totalorder %s19, 1
      %p147 = scmp.ne.s32.totalorder %s142, %s144
      %p148 = scmp.eq.s32.totalorder %s19, 0
      %p149 = por %p147, %p148
      %p150 = scmp.ne.s32.totalorder %s142, %s144
      %p151 = scmp.eq.s32.totalorder %s24, 1
      %p152 = por %p150, %p151
      %p153 = scmp.ne.s32.totalorder %s144, %s145
      %p154 = scmp.eq.s32.totalorder %s24, 0
      %p155 = por %p153, %p154
      %p156 = scmp.ne.s32.totalorder %s144, %s145
      %p157 = scmp.eq.s32.totalorder %s25, 1
      %p158 = por %p156, %p157
      %p160 = scmp.ne.s32.totalorder %s145, %s159
      %p161 = scmp.eq.s32.totalorder %s25, 0
      %p162 = por %p160, %p161
      %s164 = sadd.s32 %s163, 1
      %p167 = scmp.eq.s32.totalorder %s19, 1
      %p168 = scmp.ne.s32.totalorder %s163, %s165
      %p169 = scmp.eq.s32.totalorder %s19, 0
      %p170 = por %p168, %p169
      %p171 = scmp.ne.s32.totalorder %s163, %s165
      %p172 = scmp.eq.s32.totalorder %s24, 1
      %p173 = por %p171, %p172
      %p174 = scmp.ne.s32.totalorder %s165, %s166
      %p175 = scmp.eq.s32.totalorder %s24, 0
      %p176 = por %p174, %p175
      %p177 = scmp.ne.s32.totalorder %s165, %s166
      %p178 = scmp.eq.s32.totalorder %s25, 1
      %p179 = por %p177, %p178
      %p181 = scmp.ne.s32.totalorder %s166, %s180
      %p182 = scmp.eq.s32.totalorder %s25, 0
      %p183 = por %p181, %p182
      %s184 = ssub.s32 %s19, %s26
      %p185 = scmp.eq.s32.totalorder %s184, 0
      %s187 = sadd.s32 %s186, 1
      %s188 = scalar_select %p185, %s186, %s187
      %p191 = pneg %p185
      %p192 = scmp.eq.s32.totalorder %s19, 1
      %p193 = por %p191, %p192
      %p194 = scmp.ne.s32.totalorder %s186, %s189
      %p195 = scmp.eq.s32.totalorder %s19, 0
      %p196 = por %p194, %p195
      %p197 = scmp.ne.s32.totalorder %s186, %s189
      %p198 = scmp.eq.s32.totalorder %s24, 1
      %p199 = por %p197, %p198
      %p200 = scmp.ne.s32.totalorder %s189, %s190
      %p201 = scmp.eq.s32.totalorder %s24, 0
      %p202 = por %p200, %p201
      %p203 = scmp.ne.s32.totalorder %s189, %s190
      %p204 = scmp.eq.s32.totalorder %s25, 1
      %p205 = por %p203, %p204
      %p207 = scmp.ne.s32.totalorder %s190, %s206
      %p208 = scmp.eq.s32.totalorder %s25, 0
      %p209 = por %p207, %p208
      %p210 = scmp.le.s32.totalorder 1, %s19
      %p211 = scmp.lt.s32.totalorder %s19, 3
      %p212 = pnand %p210, %p211
      %p213 = pneg %p212
      // Predicated region
      $region9: #{tpu_custom_call.1} parent=5 // pred_check
        _
      $region10: #{tpu_custom_call.1} parent=5 // pred_check_branch
        %215 = sbr.rel (%p212) target = $region12
      $region11: #{tpu_custom_call.1} parent=5 // pred_region
        %s216 = ssub.s32 %s19, 1
        // Predicated region
        $region13: #{tpu_custom_call.1} parent=11 // pred_check
          %p217 = pneg %p92
        $region14: #{tpu_custom_call.1} parent=11 // pred_check_branch
          %219 = sbr.rel (%p217) target = $region16
        $region15: #{tpu_custom_call.1} parent=11 // pred_region
          _
        $region16: #{tpu_custom_call.1} parent=11 // pred_fallthru
          _
        // Predicated region
        $region17: #{tpu_custom_call.1} parent=11 // pred_check
          %p220 = pneg %p113
        $region18: #{tpu_custom_call.1} parent=11 // pred_check_branch
          %222 = sbr.rel (%p220) target = $region20
        $region19: #{tpu_custom_call.1} parent=11 // pred_region
          _
        $region20: #{tpu_custom_call.1} parent=11 // pred_fallthru
          _
        // Predicated region
        $region21: #{tpu_custom_call.1} parent=11 // pred_check
          %p223 = pneg %p134
        $region22: #{tpu_custom_call.1} parent=11 // pred_check_branch
          %225 = sbr.rel (%p223) target = $region24
        $region23: #{tpu_custom_call.1} parent=11 // pred_region
          _
        $region24: #{tpu_custom_call.1} parent=11 // pred_fallthru
          _
        // Predicated region
        $region25: #{tpu_custom_call.1} parent=11 // pred_check
          %p226 = pneg %p155
        $region26: #{tpu_custom_call.1} parent=11 // pred_check_branch
          %228 = sbr.rel (%p226) target = $region28
        $region27: #{tpu_custom_call.1} parent=11 // pred_region
          _
        $region28: #{tpu_custom_call.1} parent=11 // pred_fallthru
          _
        // Predicated region
        $region29: #{tpu_custom_call.1} parent=11 // pred_check
          %p229 = pneg %p176
        $region30: #{tpu_custom_call.1} parent=11 // pred_check_branch
          %231 = sbr.rel (%p229) target = $region32
        $region31: #{tpu_custom_call.1} parent=11 // pred_region
          _
        $region32: #{tpu_custom_call.1} parent=11 // pred_fallthru
          _
      $region12: #{tpu_custom_call.1} parent=5 // pred_fallthru
        _
      %p232 = scmp.lt.s32.totalorder %s19, 2
      // Predicated region
      $region33: #{tpu_custom_call.1} parent=5 // pred_check
        %p233 = pneg %p232
      $region34: #{tpu_custom_call.1} parent=5 // pred_check_branch
        %235 = sbr.rel (%p233) target = $region36
      $region35: #{tpu_custom_call.1} parent=5 // pred_region
        // Predicated region
        $region37: #{tpu_custom_call.1} parent=35 // pred_check
          %p236 = pneg %p39
        $region38: #{tpu_custom_call.1} parent=35 // pred_check_branch
          %238 = sbr.rel (%p236) target = $region40
        $region39: #{tpu_custom_call.1} parent=35 // pred_region
          %s239 = smul.u32 32, %s19
          %p240 = scmp.lt.s32.totalorder %s239, 63
          %s241 = scalar_select %p240, %s239, 63
          %s242 = smul.addr %s241, 4
          %s243 = scalar_lea.vmem %s0, %s242
          %s244 = smul.u32 32, %s19
        $region40: #{tpu_custom_call.1} parent=35 // pred_fallthru
          _
        // Predicated region
        $region41: #{tpu_custom_call.1} parent=35 // pred_check
          %p245 = pneg %p65
        $region42: #{tpu_custom_call.1} parent=35 // pred_check_branch
          %247 = sbr.rel (%p245) target = $region44
        $region43: #{tpu_custom_call.1} parent=35 // pred_region
          %s248 = sand.u32 %s55, 1
          %s249 = scalar_lea.sflag [#allocation3], %s248
          %s250 = sand.u32 %s55, 1
          %s251 = smul.addr %s250, 256
          %s252 = scalar_lea.vmem [#allocation2], %s251
          %s253 = smul.u32 32, %s19
          %255 = vsyncadd %s249, 0
          %s256 = smul.addr %s253, 2
          %s257 = smul.addr %s256, 4
          %s258 = scalar_lea.hbm %s1, %s257
          %s259 = sshll.u32 %s258, 4
          %s260 = int_to_ptr.hbm [resolvable:$true] %s259
          %s261 = sshll.u32 %s252, 4
          %s262 = int_to_ptr.vmem [resolvable:$true] %s261
          %267 = dma.hbm_to_vmem [thread:$0]  %s260, 4096, %s262, %s249, 128, 128, 8
        $region44: #{tpu_custom_call.1} parent=35 // pred_fallthru
          _
      $region36: #{tpu_custom_call.1} parent=5 // pred_fallthru
        _
      %p268 = scmp.le.s32.totalorder 1, %s19
      %p269 = scmp.lt.s32.totalorder %s19, 3
      %p270 = pnand %p268, %p269
      %p271 = pneg %p270
      // Predicated region
      $region45: #{tpu_custom_call.1} parent=5 // pred_check
        _
      $region46: #{tpu_custom_call.1} parent=5 // pred_check_branch
        %273 = sbr.rel (%p270) target = $region48
      $region47: #{tpu_custom_call.1} parent=5 // pred_region
        %s274 = ssub.s32 %s19, 1
        %s275 = sand.u32 %s58, 1
        %s276 = scalar_lea.sflag [#allocation3], %s275
        %s277 = sand.u32 %s58, 1
        %s278 = smul.addr %s277, 256
        %s279 = scalar_lea.vmem [#allocation2], %s278
        // Predicated region
        $region49: #{tpu_custom_call.1} parent=47 // pred_check
          %p280 = pneg %p71
        $region50: #{tpu_custom_call.1} parent=47 // pred_check_branch
          %282 = sbr.rel (%p280) target = $region52
        $region51: #{tpu_custom_call.1} parent=47 // pred_region
          %284 = dma.done %s276, 4096
        $region52: #{tpu_custom_call.1} parent=47 // pred_fallthru
          _
        %s285 = smul.u32 32, %s24
        %p286 = scmp.lt.s32.totalorder %s285, 63
        %s287 = scalar_select %p286, %s285, 63
        %s288 = smul.addr %s287, 4
        %s289 = scalar_lea.vmem %s0, %s288
        %p290 = pneg %p45
        %p291 = pneg %p42
        %s292 = sand.u32 %s58, 1
        %s293 = scalar_lea.sflag [#allocation3], %s292
        %s294 = sand.u32 %s58, 1
        %s295 = smul.addr %s294, 256
        %s296 = scalar_lea.vmem [#allocation2], %s295
        %p297 = pneg %p71
        %p298 = pneg %p68
        %p299 = pneg %p92
        %p300 = pneg %p89
        %p301 = pneg %p113
        %p302 = pneg %p110
        %p303 = pneg %p134
        %p304 = pneg %p131
        %p305 = pneg %p155
        %p306 = pneg %p152
        %p307 = pneg %p176
        %p308 = pneg %p173
        %p309 = pneg %p202
        %p310 = pneg %p199
        %s311 = sand.u32 %s189, 1
        %s312 = scalar_lea.sflag [#allocation4], %s311
        %s313 = sand.u32 %s189, 1
        %s314 = smul.addr %s313, 512
        %s315 = scalar_lea.vmem [#allocation5], %s314
        %s316 = smul.u32 32, %s24
        %p317 = scmp.lt.s32.totalorder %s316, 63
        %s318 = scalar_select %p317, %s316, 63
        %s319 = smul.addr %s318, 4
        %s320 = scalar_lea.vmem %s0, %s319
        %s321 = smul.u32 32, %s24
        %s322 = smul.u32 32, %s24
        %s323 = smul.u32 32, %s24
        %v325 = vld [vmem:[%s320] sm:$0xf]
        %v326 = vld [vmem:[%s320 + $0x4] sm:$0xf]
        %v327 = vld [vmem:[%s320 + $0x8] sm:$0xf]
        %v328 = vld [vmem:[%s320 + $0xc] sm:$0xf]
        %v329 = vld [vmem:[%s320 + $0x10] sm:$0xf]
        %v330 = vld [vmem:[%s320 + $0x14] sm:$0xf]
        %v331 = vld [vmem:[%s320 + $0x18] sm:$0xf]
        %v332 = vld [vmem:[%s320 + $0x1c] sm:$0xf]
        %v333 = vld [vmem:[%s320 + $0x20] sm:$0xf]
        %v334 = vld [vmem:[%s320 + $0x24] sm:$0xf]
        %v335 = vld [vmem:[%s320 + $0x28] sm:$0xf]
        %v336 = vld [vmem:[%s320 + $0x2c] sm:$0xf]
        %v337 = vld [vmem:[%s320 + $0x30] sm:$0xf]
        %v338 = vld [vmem:[%s320 + $0x34] sm:$0xf]
        %v339 = vld [vmem:[%s320 + $0x38] sm:$0xf]
        %v340 = vld [vmem:[%s320 + $0x3c] sm:$0xf]
        %v341 = vld [vmem:[%s320 + $0x40] sm:$0xf]
        %v342 = vld [vmem:[%s320 + $0x44] sm:$0xf]
        %v343 = vld [vmem:[%s320 + $0x48] sm:$0xf]
        %v344 = vld [vmem:[%s320 + $0x4c] sm:$0xf]
        %v345 = vld [vmem:[%s320 + $0x50] sm:$0xf]
        %v346 = vld [vmem:[%s320 + $0x54] sm:$0xf]
        %v347 = vld [vmem:[%s320 + $0x58] sm:$0xf]
        %v348 = vld [vmem:[%s320 + $0x5c] sm:$0xf]
        %v349 = vld [vmem:[%s320 + $0x60] sm:$0xf]
        %v350 = vld [vmem:[%s320 + $0x64] sm:$0xf]
        %v351 = vld [vmem:[%s320 + $0x68] sm:$0xf]
        %v352 = vld [vmem:[%s320 + $0x6c] sm:$0xf]
        %v353 = vld [vmem:[%s320 + $0x70] sm:$0xf]
        %v354 = vld [vmem:[%s320 + $0x74] sm:$0xf]
        %v355 = vld [vmem:[%s320 + $0x78] sm:$0xf]
        %v356 = vld [vmem:[%s320 + $0x7c] sm:$0xf]
        %v357 = vld [vmem:[%s2] sm:$0xf]
        %v358 = vld [vmem:[%s2 + $0x4] sm:$0xf]
        %v359 = vld [vmem:[%s2 + $0x8] sm:$0xf]
        %v360 = vld [vmem:[%s2 + $0xc] sm:$0xf]
        %v361 = vld [vmem:[%s279] sm:$0xff]
        %v362 = vld [vmem:[%s279 + $0x8] sm:$0xff]
        %v363 = vld [vmem:[%s279 + $0x10] sm:$0xff]
        %v364 = vld [vmem:[%s279 + $0x18] sm:$0xff]
        %v365 = vld [vmem:[%s279 + $0x20] sm:$0xff]
        %v366 = vld [vmem:[%s279 + $0x28] sm:$0xff]
        %v367 = vld [vmem:[%s279 + $0x30] sm:$0xff]
        %v368 = vld [vmem:[%s279 + $0x38] sm:$0xff]
        %v369 = vld [vmem:[%s279 + $0x40] sm:$0xff]
        %v370 = vld [vmem:[%s279 + $0x48] sm:$0xff]
        %v371 = vld [vmem:[%s279 + $0x50] sm:$0xff]
        %v372 = vld [vmem:[%s279 + $0x58] sm:$0xff]
        %v373 = vld [vmem:[%s279 + $0x60] sm:$0xff]
        %v374 = vld [vmem:[%s279 + $0x68] sm:$0xff]
        %v375 = vld [vmem:[%s279 + $0x70] sm:$0xff]
        %v376 = vld [vmem:[%s279 + $0x78] sm:$0xff]
        %v377 = vld [vmem:[%s279 + $0x80] sm:$0xff]
        %v378 = vld [vmem:[%s279 + $0x88] sm:$0xff]
        %v379 = vld [vmem:[%s279 + $0x90] sm:$0xff]
        %v380 = vld [vmem:[%s279 + $0x98] sm:$0xff]
        %v381 = vld [vmem:[%s279 + $0xa0] sm:$0xff]
        %v382 = vld [vmem:[%s279 + $0xa8] sm:$0xff]
        %v383 = vld [vmem:[%s279 + $0xb0] sm:$0xff]
        %v384 = vld [vmem:[%s279 + $0xb8] sm:$0xff]
        %v385 = vld [vmem:[%s279 + $0xc0] sm:$0xff]
        %v386 = vld [vmem:[%s279 + $0xc8] sm:$0xff]
        %v387 = vld [vmem:[%s279 + $0xd0] sm:$0xff]
        %v388 = vld [vmem:[%s279 + $0xd8] sm:$0xff]
        %v389 = vld [vmem:[%s279 + $0xe0] sm:$0xff]
        %v390 = vld [vmem:[%s279 + $0xe8] sm:$0xff]
        %v391 = vld [vmem:[%s279 + $0xf0] sm:$0xff]
        %v392 = vld [vmem:[%s279 + $0xf8] sm:$0xff]
        %v393 = vld [vmem:[%s3] sm:$0xf]
        %v394 = vld [vmem:[%s3 + $0x4] sm:$0xf]
        %v395 = vld [vmem:[%s3 + $0x8] sm:$0xf]
        %v396 = vld [vmem:[%s3 + $0xc] sm:$0xf]
        %v397 = vld [vmem:[%s3 + $0x10] sm:$0xf]
        %v398 = vld [vmem:[%s3 + $0x14] sm:$0xf]
        %v399 = vld [vmem:[%s3 + $0x18] sm:$0xf]
        %v400 = vld [vmem:[%s3 + $0x1c] sm:$0xf]
        %v401 = vld [vmem:[%s3 + $0x20] sm:$0xf]
        %v402 = vld [vmem:[%s3 + $0x24] sm:$0xf]
        %v403 = vld [vmem:[%s3 + $0x28] sm:$0xf]
        %v404 = vld [vmem:[%s3 + $0x2c] sm:$0xf]
        %v405 = vld [vmem:[%s3 + $0x30] sm:$0xf]
        %v406 = vld [vmem:[%s3 + $0x34] sm:$0xf]
        %v407 = vld [vmem:[%s3 + $0x38] sm:$0xf]
        %v408 = vld [vmem:[%s3 + $0x3c] sm:$0xf]
        %v409 = vld [vmem:[%s3 + $0x40] sm:$0xf]
        %v410 = vld [vmem:[%s3 + $0x44] sm:$0xf]
        %v411 = vld [vmem:[%s3 + $0x48] sm:$0xf]
        %v412 = vld [vmem:[%s3 + $0x4c] sm:$0xf]
        %v413 = vld [vmem:[%s3 + $0x50] sm:$0xf]
        %v414 = vld [vmem:[%s3 + $0x54] sm:$0xf]
        %v415 = vld [vmem:[%s3 + $0x58] sm:$0xf]
        %v416 = vld [vmem:[%s3 + $0x5c] sm:$0xf]
        %v417 = vld [vmem:[%s3 + $0x60] sm:$0xf]
        %v418 = vld [vmem:[%s3 + $0x64] sm:$0xf]
        %v419 = vld [vmem:[%s3 + $0x68] sm:$0xf]
        %v420 = vld [vmem:[%s3 + $0x6c] sm:$0xf]
        %v421 = vld [vmem:[%s3 + $0x70] sm:$0xf]
        %v422 = vld [vmem:[%s3 + $0x74] sm:$0xf]
        %v423 = vld [vmem:[%s3 + $0x78] sm:$0xf]
        %v424 = vld [vmem:[%s3 + $0x7c] sm:$0xf]
        %v457 = vunpack.c.l.b16 %v361
        %v458 = vunpack.c.h.b16 %v361
        %v459 = vunpack.c.l.b16 %v362
        %v460 = vunpack.c.h.b16 %v362
        %v461 = vunpack.c.l.b16 %v363
        %v462 = vunpack.c.h.b16 %v363
        %v463 = vunpack.c.l.b16 %v364
        %v464 = vunpack.c.h.b16 %v364
        %v465 = vunpack.c.l.b16 %v365
        %v466 = vunpack.c.h.b16 %v365
        %v467 = vunpack.c.l.b16 %v366
        %v468 = vunpack.c.h.b16 %v366
        %v469 = vunpack.c.l.b16 %v367
        %v470 = vunpack.c.h.b16 %v367
        %v471 = vunpack.c.l.b16 %v368
        %v472 = vunpack.c.h.b16 %v368
        %v473 = vunpack.c.l.b16 %v369
        %v474 = vunpack.c.h.b16 %v369
        %v475 = vunpack.c.l.b16 %v370
        %v476 = vunpack.c.h.b16 %v370
        %v477 = vunpack.c.l.b16 %v371
        %v478 = vunpack.c.h.b16 %v371
        %v479 = vunpack.c.l.b16 %v372
        %v480 = vunpack.c.h.b16 %v372
        %v481 = vunpack.c.l.b16 %v373
        %v482 = vunpack.c.h.b16 %v373
        %v483 = vunpack.c.l.b16 %v374
        %v484 = vunpack.c.h.b16 %v374
        %v485 = vunpack.c.l.b16 %v375
        %v486 = vunpack.c.h.b16 %v375
        %v487 = vunpack.c.l.b16 %v376
        %v488 = vunpack.c.h.b16 %v376
        %v489 = vunpack.c.l.b16 %v377
        %v490 = vunpack.c.h.b16 %v377
        %v491 = vunpack.c.l.b16 %v378
        %v492 = vunpack.c.h.b16 %v378
        %v493 = vunpack.c.l.b16 %v379
        %v494 = vunpack.c.h.b16 %v379
        %v495 = vunpack.c.l.b16 %v380
        %v496 = vunpack.c.h.b16 %v380
        %v497 = vunpack.c.l.b16 %v381
        %v498 = vunpack.c.h.b16 %v381
        %v499 = vunpack.c.l.b16 %v382
        %v500 = vunpack.c.h.b16 %v382
        %v501 = vunpack.c.l.b16 %v383
        %v502 = vunpack.c.h.b16 %v383
        %v503 = vunpack.c.l.b16 %v384
        %v504 = vunpack.c.h.b16 %v384
        %v505 = vunpack.c.l.b16 %v385
        %v506 = vunpack.c.h.b16 %v385
        %v507 = vunpack.c.l.b16 %v386
        %v508 = vunpack.c.h.b16 %v386
        %v509 = vunpack.c.l.b16 %v387
        %v510 = vunpack.c.h.b16 %v387
        %v511 = vunpack.c.l.b16 %v388
        %v512 = vunpack.c.h.b16 %v388
        %v513 = vunpack.c.l.b16 %v389
        %v514 = vunpack.c.h.b16 %v389
        %v515 = vunpack.c.l.b16 %v390
        %v516 = vunpack.c.h.b16 %v390
        %v517 = vunpack.c.l.b16 %v391
        %v518 = vunpack.c.h.b16 %v391
        %v519 = vunpack.c.l.b16 %v392
        %v520 = vunpack.c.h.b16 %v392
        %v521 = vpack.c.b16 %v459, %v457
        %v522 = vpack.c.b16 %v460, %v458
        %v523 = vpack.c.b16 %v463, %v461
        %v524 = vpack.c.b16 %v464, %v462
        %v525 = vpack.c.b16 %v467, %v465
        %v526 = vpack.c.b16 %v468, %v466
        %v527 = vpack.c.b16 %v471, %v469
        %v528 = vpack.c.b16 %v472, %v470
        %v529 = vpack.c.b16 %v475, %v473
        %v530 = vpack.c.b16 %v476, %v474
        %v531 = vpack.c.b16 %v479, %v477
        %v532 = vpack.c.b16 %v480, %v478
        %v533 = vpack.c.b16 %v483, %v481
        %v534 = vpack.c.b16 %v484, %v482
        %v535 = vpack.c.b16 %v487, %v485
        %v536 = vpack.c.b16 %v488, %v486
        %v537 = vpack.c.b16 %v491, %v489
        %v538 = vpack.c.b16 %v492, %v490
        %v539 = vpack.c.b16 %v495, %v493
        %v540 = vpack.c.b16 %v496, %v494
        %v541 = vpack.c.b16 %v499, %v497
        %v542 = vpack.c.b16 %v500, %v498
        %v543 = vpack.c.b16 %v503, %v501
        %v544 = vpack.c.b16 %v504, %v502
        %v545 = vpack.c.b16 %v507, %v505
        %v546 = vpack.c.b16 %v508, %v506
        %v547 = vpack.c.b16 %v511, %v509
        %v548 = vpack.c.b16 %v512, %v510
        %v549 = vpack.c.b16 %v515, %v513
        %v550 = vpack.c.b16 %v516, %v514
        %v551 = vpack.c.b16 %v519, %v517
        %v552 = vpack.c.b16 %v520, %v518
        %v617 = vunpack.c.l.b16 %v393
        %v618 = vunpack.c.l.b16 %v394
        %v619 = vunpack.c.l.b16 %v395
        %v620 = vunpack.c.l.b16 %v396
        %v621 = vunpack.c.l.b16 %v397
        %v622 = vunpack.c.l.b16 %v398
        %v623 = vunpack.c.l.b16 %v399
        %v624 = vunpack.c.l.b16 %v400
        %v625 = vunpack.c.l.b16 %v401
        %v626 = vunpack.c.l.b16 %v402
        %v627 = vunpack.c.l.b16 %v403
        %v628 = vunpack.c.l.b16 %v404
        %v629 = vunpack.c.l.b16 %v405
        %v630 = vunpack.c.l.b16 %v406
        %v631 = vunpack.c.l.b16 %v407
        %v632 = vunpack.c.l.b16 %v408
        %v633 = vunpack.c.l.b16 %v409
        %v634 = vunpack.c.l.b16 %v410
        %v635 = vunpack.c.l.b16 %v411
        %v636 = vunpack.c.l.b16 %v412
        %v637 = vunpack.c.l.b16 %v413
        %v638 = vunpack.c.l.b16 %v414
        %v639 = vunpack.c.l.b16 %v415
        %v640 = vunpack.c.l.b16 %v416
        %v641 = vunpack.c.l.b16 %v417
        %v642 = vunpack.c.l.b16 %v418
        %v643 = vunpack.c.l.b16 %v419
        %v644 = vunpack.c.l.b16 %v420
        %v645 = vunpack.c.l.b16 %v421
        %v646 = vunpack.c.l.b16 %v422
        %v647 = vunpack.c.l.b16 %v423
        %v648 = vunpack.c.l.b16 %v424
        %v649 = vpack.c.b16 %v618, %v617
        %v650 = vpack.c.b16 %v620, %v619
        %v651 = vpack.c.b16 %v622, %v621
        %v652 = vpack.c.b16 %v624, %v623
        %v653 = vpack.c.b16 %v626, %v625
        %v654 = vpack.c.b16 %v628, %v627
        %v655 = vpack.c.b16 %v630, %v629
        %v656 = vpack.c.b16 %v632, %v631
        %v657 = vpack.c.b16 %v634, %v633
        %v658 = vpack.c.b16 %v636, %v635
        %v659 = vpack.c.b16 %v638, %v637
        %v660 = vpack.c.b16 %v640, %v639
        %v661 = vpack.c.b16 %v642, %v641
        %v662 = vpack.c.b16 %v644, %v643
        %v663 = vpack.c.b16 %v646, %v645
        %v664 = vpack.c.b16 %v648, %v647
        %681 = vmatpush.bf16.msra.mxu0 %v656
        %682 = vmatpush.bf16.msra.mxu0 %v655
        %683 = vmatpush.bf16.msra.mxu0 %v654
        %684 = vmatpush.bf16.msra.mxu0 %v653
        %685 = vmatpush.bf16.msra.mxu0 %v652
        %686 = vmatpush.bf16.msra.mxu0 %v651
        %687 = vmatpush.bf16.msra.mxu0 %v650
        %688 = vmatpush.bf16.msra.mxu0 %v649
        %689 = vmatmul.bf16.gmra.mxu0 %v521
        %v690 = vpop.f32.mrf.mxu0
        %v691 = vadd.f32 0.0, %v690
        %v692 = vpop.f32.mrf.mxu0
        %v693 = vadd.f32 0.0, %v692
        %694 = vmatmul.bf16.gmra.mxu0 %v523
        %v695 = vpop.f32.mrf.mxu0
        %v696 = vadd.f32 0.0, %v695
        %v697 = vpop.f32.mrf.mxu0
        %v698 = vadd.f32 0.0, %v697
        %699 = vmatmul.bf16.gmra.mxu0 %v525
        %v700 = vpop.f32.mrf.mxu0
        %v701 = vadd.f32 0.0, %v700
        %v702 = vpop.f32.mrf.mxu0
        %v703 = vadd.f32 0.0, %v702
        %704 = vmatmul.bf16.gmra.mxu0 %v527
        %v705 = vpop.f32.mrf.mxu0
        %v706 = vadd.f32 0.0, %v705
        %v707 = vpop.f32.mrf.mxu0
        %v708 = vadd.f32 0.0, %v707
        %709 = vmatmul.bf16.gmra.mxu0 %v529
        %v710 = vpop.f32.mrf.mxu0
        %v711 = vadd.f32 0.0, %v710
        %v712 = vpop.f32.mrf.mxu0
        %v713 = vadd.f32 0.0, %v712
        %714 = vmatmul.bf16.gmra.mxu0 %v531
        %v715 = vpop.f32.mrf.mxu0
        %v716 = vadd.f32 0.0, %v715
        %v717 = vpop.f32.mrf.mxu0
        %v718 = vadd.f32 0.0, %v717
        %719 = vmatmul.bf16.gmra.mxu0 %v533
        %v720 = vpop.f32.mrf.mxu0
        %v721 = vadd.f32 0.0, %v720
        %v722 = vpop.f32.mrf.mxu0
        %v723 = vadd.f32 0.0, %v722
        %724 = vmatmul.bf16.gmra.mxu0 %v535
        %v725 = vpop.f32.mrf.mxu0
        %v726 = vadd.f32 0.0, %v725
        %v727 = vpop.f32.mrf.mxu0
        %v728 = vadd.f32 0.0, %v727
        %729 = vmatmul.bf16.gmra.mxu0 %v537
        %v730 = vpop.f32.mrf.mxu0
        %v731 = vadd.f32 0.0, %v730
        %v732 = vpop.f32.mrf.mxu0
        %v733 = vadd.f32 0.0, %v732
        %734 = vmatmul.bf16.gmra.mxu0 %v539
        %v735 = vpop.f32.mrf.mxu0
        %v736 = vadd.f32 0.0, %v735
        %v737 = vpop.f32.mrf.mxu0
        %v738 = vadd.f32 0.0, %v737
        %739 = vmatmul.bf16.gmra.mxu0 %v541
        %v740 = vpop.f32.mrf.mxu0
        %v741 = vadd.f32 0.0, %v740
        %v742 = vpop.f32.mrf.mxu0
        %v743 = vadd.f32 0.0, %v742
        %744 = vmatmul.bf16.gmra.mxu0 %v543
        %v745 = vpop.f32.mrf.mxu0
        %v746 = vadd.f32 0.0, %v745
        %v747 = vpop.f32.mrf.mxu0
        %v748 = vadd.f32 0.0, %v747
        %749 = vmatmul.bf16.gmra.mxu0 %v545
        %v750 = vpop.f32.mrf.mxu0
        %v751 = vadd.f32 0.0, %v750
        %v752 = vpop.f32.mrf.mxu0
        %v753 = vadd.f32 0.0, %v752
        %754 = vmatmul.bf16.gmra.mxu0 %v547
        %v755 = vpop.f32.mrf.mxu0
        %v756 = vadd.f32 0.0, %v755
        %v757 = vpop.f32.mrf.mxu0
        %v758 = vadd.f32 0.0, %v757
        %759 = vmatmul.bf16.gmra.mxu0 %v549
        %v760 = vpop.f32.mrf.mxu0
        %v761 = vadd.f32 0.0, %v760
        %v762 = vpop.f32.mrf.mxu0
        %v763 = vadd.f32 0.0, %v762
        %764 = vmatmul.bf16.gmra.mxu0 %v551
        %v765 = vpop.f32.mrf.mxu0
        %v766 = vadd.f32 0.0, %v765
        %v767 = vpop.f32.mrf.mxu0
        %v768 = vadd.f32 0.0, %v767
        %769 = vdwg.mxu0
        %770 = vmatpush.bf16.msra.mxu0 %v664
        %771 = vmatpush.bf16.msra.mxu0 %v663
        %772 = vmatpush.bf16.msra.mxu0 %v662
        %773 = vmatpush.bf16.msra.mxu0 %v661
        %774 = vmatpush.bf16.msra.mxu0 %v660
        %775 = vmatpush.bf16.msra.mxu0 %v659
        %776 = vmatpush.bf16.msra.mxu0 %v658
        %777 = vmatpush.bf16.msra.mxu0 %v657
        %778 = vmatmul.bf16.gmra.mxu0 %v522
        %v779 = vpop.f32.mrf.mxu0
        %v780 = vadd.f32 %v691, %v779
        %v781 = vpop.f32.mrf.mxu0
        %v782 = vadd.f32 %v693, %v781
        %783 = vmatmul.bf16.gmra.mxu0 %v524
        %v784 = vpop.f32.mrf.mxu0
        %v785 = vadd.f32 %v696, %v784
        %v786 = vpop.f32.mrf.mxu0
        %v787 = vadd.f32 %v698, %v786
        %788 = vmatmul.bf16.gmra.mxu0 %v526
        %v789 = vpop.f32.mrf.mxu0
        %v790 = vadd.f32 %v701, %v789
        %v791 = vpop.f32.mrf.mxu0
        %v792 = vadd.f32 %v703, %v791
        %793 = vmatmul.bf16.gmra.mxu0 %v528
        %v794 = vpop.f32.mrf.mxu0
        %v795 = vadd.f32 %v706, %v794
        %v796 = vpop.f32.mrf.mxu0
        %v797 = vadd.f32 %v708, %v796
        %798 = vmatmul.bf16.gmra.mxu0 %v530
        %v799 = vpop.f32.mrf.mxu0
        %v800 = vadd.f32 %v711, %v799
        %v801 = vpop.f32.mrf.mxu0
        %v802 = vadd.f32 %v713, %v801
        %803 = vmatmul.bf16.gmra.mxu0 %v532
        %v804 = vpop.f32.mrf.mxu0
        %v805 = vadd.f32 %v716, %v804
        %v806 = vpop.f32.mrf.mxu0
        %v807 = vadd.f32 %v718, %v806
        %808 = vmatmul.bf16.gmra.mxu0 %v534
        %v809 = vpop.f32.mrf.mxu0
        %v810 = vadd.f32 %v721, %v809
        %v811 = vpop.f32.mrf.mxu0
        %v812 = vadd.f32 %v723, %v811
        %813 = vmatmul.bf16.gmra.mxu0 %v536
        %v814 = vpop.f32.mrf.mxu0
        %v815 = vadd.f32 %v726, %v814
        %v816 = vpop.f32.mrf.mxu0
        %v817 = vadd.f32 %v728, %v816
        %818 = vmatmul.bf16.gmra.mxu0 %v538
        %v819 = vpop.f32.mrf.mxu0
        %v820 = vadd.f32 %v731, %v819
        %v821 = vpop.f32.mrf.mxu0
        %v822 = vadd.f32 %v733, %v821
        %823 = vmatmul.bf16.gmra.mxu0 %v540
        %v824 = vpop.f32.mrf.mxu0
        %v825 = vadd.f32 %v736, %v824
        %v826 = vpop.f32.mrf.mxu0
        %v827 = vadd.f32 %v738, %v826
        %828 = vmatmul.bf16.gmra.mxu0 %v542
        %v829 = vpop.f32.mrf.mxu0
        %v830 = vadd.f32 %v741, %v829
        %v831 = vpop.f32.mrf.mxu0
        %v832 = vadd.f32 %v743, %v831
        %833 = vmatmul.bf16.gmra.mxu0 %v544
        %v834 = vpop.f32.mrf.mxu0
        %v835 = vadd.f32 %v746, %v834
        %v836 = vpop.f32.mrf.mxu0
        %v837 = vadd.f32 %v748, %v836
        %838 = vmatmul.bf16.gmra.mxu0 %v546
        %v839 = vpop.f32.mrf.mxu0
        %v840 = vadd.f32 %v751, %v839
        %v841 = vpop.f32.mrf.mxu0
        %v842 = vadd.f32 %v753, %v841
        %843 = vmatmul.bf16.gmra.mxu0 %v548
        %v844 = vpop.f32.mrf.mxu0
        %v845 = vadd.f32 %v756, %v844
        %v846 = vpop.f32.mrf.mxu0
        %v847 = vadd.f32 %v758, %v846
        %848 = vmatmul.bf16.gmra.mxu0 %v550
        %v849 = vpop.f32.mrf.mxu0
        %v850 = vadd.f32 %v761, %v849
        %v851 = vpop.f32.mrf.mxu0
        %v852 = vadd.f32 %v763, %v851
        %853 = vmatmul.bf16.gmra.mxu0 %v552
        %v854 = vpop.f32.mrf.mxu0
        %v855 = vadd.f32 %v766, %v854
        %v856 = vpop.f32.mrf.mxu0
        %v857 = vadd.f32 %v768, %v856
        %858 = vdwg.mxu0
        %v891 = vunpack.c.l.b16 %v325
        %v892 = vunpack.c.l.b16 %v326
        %v893 = vunpack.c.l.b16 %v327
        %v894 = vunpack.c.l.b16 %v328
        %v895 = vunpack.c.l.b16 %v329
        %v896 = vunpack.c.l.b16 %v330
        %v897 = vunpack.c.l.b16 %v331
        %v898 = vunpack.c.l.b16 %v332
        %v899 = vunpack.c.l.b16 %v333
        %v900 = vunpack.c.l.b16 %v334
        %v901 = vunpack.c.l.b16 %v335
        %v902 = vunpack.c.l.b16 %v336
        %v903 = vunpack.c.l.b16 %v337
        %v904 = vunpack.c.l.b16 %v338
        %v905 = vunpack.c.l.b16 %v339
        %v906 = vunpack.c.l.b16 %v340
        %v907 = vunpack.c.l.b16 %v341
        %v908 = vunpack.c.l.b16 %v342
        %v909 = vunpack.c.l.b16 %v343
        %v910 = vunpack.c.l.b16 %v344
        %v911 = vunpack.c.l.b16 %v345
        %v912 = vunpack.c.l.b16 %v346
        %v913 = vunpack.c.l.b16 %v347
        %v914 = vunpack.c.l.b16 %v348
        %v915 = vunpack.c.l.b16 %v349
        %v916 = vunpack.c.l.b16 %v350
        %v917 = vunpack.c.l.b16 %v351
        %v918 = vunpack.c.l.b16 %v352
        %v919 = vunpack.c.l.b16 %v353
        %v920 = vunpack.c.l.b16 %v354
        %v921 = vunpack.c.l.b16 %v355
        %v922 = vunpack.c.l.b16 %v356
        %v923 = vpack.c.b16 %v892, %v891
        %v924 = vpack.c.b16 %v894, %v893
        %v925 = vpack.c.b16 %v896, %v895
        %v926 = vpack.c.b16 %v898, %v897
        %v927 = vpack.c.b16 %v900, %v899
        %v928 = vpack.c.b16 %v902, %v901
        %v929 = vpack.c.b16 %v904, %v903
        %v930 = vpack.c.b16 %v906, %v905
        %v931 = vpack.c.b16 %v908, %v907
        %v932 = vpack.c.b16 %v910, %v909
        %v933 = vpack.c.b16 %v912, %v911
        %v934 = vpack.c.b16 %v914, %v913
        %v935 = vpack.c.b16 %v916, %v915
        %v936 = vpack.c.b16 %v918, %v917
        %v937 = vpack.c.b16 %v920, %v919
        %v938 = vpack.c.b16 %v922, %v921
        %v943 = vunpack.c.l.b16 %v357
        %v944 = vunpack.c.l.b16 %v358
        %v945 = vunpack.c.l.b16 %v359
        %v946 = vunpack.c.l.b16 %v360
        %v947 = vpack.c.b16 %v944, %v943
        %v948 = vpack.c.b16 %v946, %v945
        %vm951 = vcmask 261120
        %v953 = vsel %vm951, %v923, 0
        %v956 = vsel %vm951, %v924, 0
        %v959 = vsel %vm951, %v925, 0
        %v962 = vsel %vm951, %v926, 0
        %v965 = vsel %vm951, %v927, 0
        %v968 = vsel %vm951, %v928, 0
        %v971 = vsel %vm951, %v929, 0
        %v974 = vsel %vm951, %v930, 0
        %v977 = vsel %vm951, %v931, 0
        %v980 = vsel %vm951, %v932, 0
        %v983 = vsel %vm951, %v933, 0
        %v986 = vsel %vm951, %v934, 0
        %v989 = vsel %vm951, %v935, 0
        %v992 = vsel %vm951, %v936, 0
        %v995 = vsel %vm951, %v937, 0
        %v998 = vsel %vm951, %v938, 0
        %1000 = vmatpush.bf16.msra.mxu0 0
        %1001 = vmatpush.bf16.msra.mxu0 0
        %1002 = vmatpush.bf16.msra.mxu0 0
        %1003 = vmatpush.bf16.msra.mxu0 0
        %1004 = vmatpush.bf16.msra.mxu0 0
        %1005 = vmatpush.bf16.msra.mxu0 0
        %1006 = vmatpush.bf16.msra.mxu0 %v948
        %1007 = vmatpush.bf16.msra.mxu0 %v947
        %1008 = vmatmul.bf16.gmra.mxu0 %v953
        %v1009 = vpop.f32.mrf.mxu0
        %v1010 = vadd.f32 %v780, %v1009
        %v1011 = vpop.f32.mrf.mxu0
        %v1012 = vadd.f32 %v782, %v1011
        %1013 = vmatmul.bf16.gmra.mxu0 %v956
        %v1014 = vpop.f32.mrf.mxu0
        %v1015 = vadd.f32 %v785, %v1014
        %v1016 = vpop.f32.mrf.mxu0
        %v1017 = vadd.f32 %v787, %v1016
        %1018 = vmatmul.bf16.gmra.mxu0 %v959
        %v1019 = vpop.f32.mrf.mxu0
        %v1020 = vadd.f32 %v790, %v1019
        %v1021 = vpop.f32.mrf.mxu0
        %v1022 = vadd.f32 %v792, %v1021
        %1023 = vmatmul.bf16.gmra.mxu0 %v962
        %v1024 = vpop.f32.mrf.mxu0
        %v1025 = vadd.f32 %v795, %v1024
        %v1026 = vpop.f32.mrf.mxu0
        %v1027 = vadd.f32 %v797, %v1026
        %1028 = vmatmul.bf16.gmra.mxu0 %v965
        %v1029 = vpop.f32.mrf.mxu0
        %v1030 = vadd.f32 %v800, %v1029
        %v1031 = vpop.f32.mrf.mxu0
        %v1032 = vadd.f32 %v802, %v1031
        %1033 = vmatmul.bf16.gmra.mxu0 %v968
        %v1034 = vpop.f32.mrf.mxu0
        %v1035 = vadd.f32 %v805, %v1034
        %v1036 = vpop.f32.mrf.mxu0
        %v1037 = vadd.f32 %v807, %v1036
        %1038 = vmatmul.bf16.gmra.mxu0 %v971
        %v1039 = vpop.f32.mrf.mxu0
        %v1040 = vadd.f32 %v810, %v1039
        %v1041 = vpop.f32.mrf.mxu0
        %v1042 = vadd.f32 %v812, %v1041
        %1043 = vmatmul.bf16.gmra.mxu0 %v974
        %v1044 = vpop.f32.mrf.mxu0
        %v1045 = vadd.f32 %v815, %v1044
        %v1046 = vpop.f32.mrf.mxu0
        %v1047 = vadd.f32 %v817, %v1046
        %1048 = vmatmul.bf16.gmra.mxu0 %v977
        %v1049 = vpop.f32.mrf.mxu0
        %v1050 = vadd.f32 %v820, %v1049
        %v1051 = vpop.f32.mrf.mxu0
        %v1052 = vadd.f32 %v822, %v1051
        %1053 = vmatmul.bf16.gmra.mxu0 %v980
        %v1054 = vpop.f32.mrf.mxu0
        %v1055 = vadd.f32 %v825, %v1054
        %v1056 = vpop.f32.mrf.mxu0
        %v1057 = vadd.f32 %v827, %v1056
        %1058 = vmatmul.bf16.gmra.mxu0 %v983
        %v1059 = vpop.f32.mrf.mxu0
        %v1060 = vadd.f32 %v830, %v1059
        %v1061 = vpop.f32.mrf.mxu0
        %v1062 = vadd.f32 %v832, %v1061
        %1063 = vmatmul.bf16.gmra.mxu0 %v986
        %v1064 = vpop.f32.mrf.mxu0
        %v1065 = vadd.f32 %v835, %v1064
        %v1066 = vpop.f32.mrf.mxu0
        %v1067 = vadd.f32 %v837, %v1066
        %1068 = vmatmul.bf16.gmra.mxu0 %v989
        %v1069 = vpop.f32.mrf.mxu0
        %v1070 = vadd.f32 %v840, %v1069
        %v1071 = vpop.f32.mrf.mxu0
        %v1072 = vadd.f32 %v842, %v1071
        %1073 = vmatmul.bf16.gmra.mxu0 %v992
        %v1074 = vpop.f32.mrf.mxu0
        %v1075 = vadd.f32 %v845, %v1074
        %v1076 = vpop.f32.mrf.mxu0
        %v1077 = vadd.f32 %v847, %v1076
        %1078 = vmatmul.bf16.gmra.mxu0 %v995
        %v1079 = vpop.f32.mrf.mxu0
        %v1080 = vadd.f32 %v850, %v1079
        %v1081 = vpop.f32.mrf.mxu0
        %v1082 = vadd.f32 %v852, %v1081
        %1083 = vmatmul.bf16.gmra.mxu0 %v998
        %v1084 = vpop.f32.mrf.mxu0
        %v1085 = vadd.f32 %v855, %v1084
        %v1086 = vpop.f32.mrf.mxu0
        %v1087 = vadd.f32 %v857, %v1086
        %1088 = vdwg.mxu0
        %v1089 = vld [vmem:[%s4] sm:$0x1]
        %v1091 = vperm.slane %v1089, 0
        %v1093 = vadd.f32 %v1010, %v1091
        %v1094 = vadd.f32 %v1012, %v1091
        %v1095 = vadd.f32 %v1015, %v1091
        %v1096 = vadd.f32 %v1017, %v1091
        %v1097 = vadd.f32 %v1020, %v1091
        %v1098 = vadd.f32 %v1022, %v1091
        %v1099 = vadd.f32 %v1025, %v1091
        %v1100 = vadd.f32 %v1027, %v1091
        %v1101 = vadd.f32 %v1030, %v1091
        %v1102 = vadd.f32 %v1032, %v1091
        %v1103 = vadd.f32 %v1035, %v1091
        %v1104 = vadd.f32 %v1037, %v1091
        %v1105 = vadd.f32 %v1040, %v1091
        %v1106 = vadd.f32 %v1042, %v1091
        %v1107 = vadd.f32 %v1045, %v1091
        %v1108 = vadd.f32 %v1047, %v1091
        %v1109 = vadd.f32 %v1050, %v1091
        %v1110 = vadd.f32 %v1052, %v1091
        %v1111 = vadd.f32 %v1055, %v1091
        %v1112 = vadd.f32 %v1057, %v1091
        %v1113 = vadd.f32 %v1060, %v1091
        %v1114 = vadd.f32 %v1062, %v1091
        %v1115 = vadd.f32 %v1065, %v1091
        %v1116 = vadd.f32 %v1067, %v1091
        %v1117 = vadd.f32 %v1070, %v1091
        %v1118 = vadd.f32 %v1072, %v1091
        %v1119 = vadd.f32 %v1075, %v1091
        %v1120 = vadd.f32 %v1077, %v1091
        %v1121 = vadd.f32 %v1080, %v1091
        %v1122 = vadd.f32 %v1082, %v1091
        %v1123 = vadd.f32 %v1085, %v1091
        %v1124 = vadd.f32 %v1087, %v1091
        %vm1125 = vcmp.ge.f32.partialorder %v1093, 0.0
        %vm1126 = vcmp.ge.f32.partialorder %v1094, 0.0
        %vm1127 = vcmp.ge.f32.partialorder %v1095, 0.0
        %vm1128 = vcmp.ge.f32.partialorder %v1096, 0.0
        %vm1129 = vcmp.ge.f32.partialorder %v1097, 0.0
        %vm1130 = vcmp.ge.f32.partialorder %v1098, 0.0
        %vm1131 = vcmp.ge.f32.partialorder %v1099, 0.0
        %vm1132 = vcmp.ge.f32.partialorder %v1100, 0.0
        %vm1133 = vcmp.ge.f32.partialorder %v1101, 0.0
        %vm1134 = vcmp.ge.f32.partialorder %v1102, 0.0
        %vm1135 = vcmp.ge.f32.partialorder %v1103, 0.0
        %vm1136 = vcmp.ge.f32.partialorder %v1104, 0.0
        %vm1137 = vcmp.ge.f32.partialorder %v1105, 0.0
        %vm1138 = vcmp.ge.f32.partialorder %v1106, 0.0
        %vm1139 = vcmp.ge.f32.partialorder %v1107, 0.0
        %vm1140 = vcmp.ge.f32.partialorder %v1108, 0.0
        %vm1141 = vcmp.ge.f32.partialorder %v1109, 0.0
        %vm1142 = vcmp.ge.f32.partialorder %v1110, 0.0
        %vm1143 = vcmp.ge.f32.partialorder %v1111, 0.0
        %vm1144 = vcmp.ge.f32.partialorder %v1112, 0.0
        %vm1145 = vcmp.ge.f32.partialorder %v1113, 0.0
        %vm1146 = vcmp.ge.f32.partialorder %v1114, 0.0
        %vm1147 = vcmp.ge.f32.partialorder %v1115, 0.0
        %vm1148 = vcmp.ge.f32.partialorder %v1116, 0.0
        %vm1149 = vcmp.ge.f32.partialorder %v1117, 0.0
        %vm1150 = vcmp.ge.f32.partialorder %v1118, 0.0
        %vm1151 = vcmp.ge.f32.partialorder %v1119, 0.0
        %vm1152 = vcmp.ge.f32.partialorder %v1120, 0.0
        %vm1153 = vcmp.ge.f32.partialorder %v1121, 0.0
        %vm1154 = vcmp.ge.f32.partialorder %v1122, 0.0
        %vm1155 = vcmp.ge.f32.partialorder %v1123, 0.0
        %vm1156 = vcmp.ge.f32.partialorder %v1124, 0.0
        %v1157 = vmul.f32 %v1093, 0.01
        %v1158 = vmul.f32 %v1094, 0.01
        %v1159 = vmul.f32 %v1095, 0.01
        %v1160 = vmul.f32 %v1096, 0.01
        %v1161 = vmul.f32 %v1097, 0.01
        %v1162 = vmul.f32 %v1098, 0.01
        %v1163 = vmul.f32 %v1099, 0.01
        %v1164 = vmul.f32 %v1100, 0.01
        %v1165 = vmul.f32 %v1101, 0.01
        %v1166 = vmul.f32 %v1102, 0.01
        %v1167 = vmul.f32 %v1103, 0.01
        %v1168 = vmul.f32 %v1104, 0.01
        %v1169 = vmul.f32 %v1105, 0.01
        %v1170 = vmul.f32 %v1106, 0.01
        %v1171 = vmul.f32 %v1107, 0.01
        %v1172 = vmul.f32 %v1108, 0.01
        %v1173 = vmul.f32 %v1109, 0.01
        %v1174 = vmul.f32 %v1110, 0.01
        %v1175 = vmul.f32 %v1111, 0.01
        %v1176 = vmul.f32 %v1112, 0.01
        %v1177 = vmul.f32 %v1113, 0.01
        %v1178 = vmul.f32 %v1114, 0.01
        %v1179 = vmul.f32 %v1115, 0.01
        %v1180 = vmul.f32 %v1116, 0.01
        %v1181 = vmul.f32 %v1117, 0.01
        %v1182 = vmul.f32 %v1118, 0.01
        %v1183 = vmul.f32 %v1119, 0.01
        %v1184 = vmul.f32 %v1120, 0.01
        %v1185 = vmul.f32 %v1121, 0.01
        %v1186 = vmul.f32 %v1122, 0.01
        %v1187 = vmul.f32 %v1123, 0.01
        %v1188 = vmul.f32 %v1124, 0.01
        %v1189 = vsel %vm1125, %v1093, %v1157
        %v1190 = vsel %vm1126, %v1094, %v1158
        %v1191 = vsel %vm1127, %v1095, %v1159
        %v1192 = vsel %vm1128, %v1096, %v1160
        %v1193 = vsel %vm1129, %v1097, %v1161
        %v1194 = vsel %vm1130, %v1098, %v1162
        %v1195 = vsel %vm1131, %v1099, %v1163
        %v1196 = vsel %vm1132, %v1100, %v1164
        %v1197 = vsel %vm1133, %v1101, %v1165
        %v1198 = vsel %vm1134, %v1102, %v1166
        %v1199 = vsel %vm1135, %v1103, %v1167
        %v1200 = vsel %vm1136, %v1104, %v1168
        %v1201 = vsel %vm1137, %v1105, %v1169
        %v1202 = vsel %vm1138, %v1106, %v1170
        %v1203 = vsel %vm1139, %v1107, %v1171
        %v1204 = vsel %vm1140, %v1108, %v1172
        %v1205 = vsel %vm1141, %v1109, %v1173
        %v1206 = vsel %vm1142, %v1110, %v1174
        %v1207 = vsel %vm1143, %v1111, %v1175
        %v1208 = vsel %vm1144, %v1112, %v1176
        %v1209 = vsel %vm1145, %v1113, %v1177
        %v1210 = vsel %vm1146, %v1114, %v1178
        %v1211 = vsel %vm1147, %v1115, %v1179
        %v1212 = vsel %vm1148, %v1116, %v1180
        %v1213 = vsel %vm1149, %v1117, %v1181
        %v1214 = vsel %vm1150, %v1118, %v1182
        %v1215 = vsel %vm1151, %v1119, %v1183
        %v1216 = vsel %vm1152, %v1120, %v1184
        %v1217 = vsel %vm1153, %v1121, %v1185
        %v1218 = vsel %vm1154, %v1122, %v1186
        %v1219 = vsel %vm1155, %v1123, %v1187
        %v1220 = vsel %vm1156, %v1124, %v1188
        %v1221 = vpack.c.bf16 %v1190, %v1189
        %v1222 = vpack.c.bf16 %v1192, %v1191
        %v1223 = vpack.c.bf16 %v1194, %v1193
        %v1224 = vpack.c.bf16 %v1196, %v1195
        %v1225 = vpack.c.bf16 %v1198, %v1197
        %v1226 = vpack.c.bf16 %v1200, %v1199
        %v1227 = vpack.c.bf16 %v1202, %v1201
        %v1228 = vpack.c.bf16 %v1204, %v1203
        %v1229 = vpack.c.bf16 %v1206, %v1205
        %v1230 = vpack.c.bf16 %v1208, %v1207
        %v1231 = vpack.c.bf16 %v1210, %v1209
        %v1232 = vpack.c.bf16 %v1212, %v1211
        %v1233 = vpack.c.bf16 %v1214, %v1213
        %v1234 = vpack.c.bf16 %v1216, %v1215
        %v1235 = vpack.c.bf16 %v1218, %v1217
        %v1236 = vpack.c.bf16 %v1220, %v1219
        %v1237 = vld [vmem:[%s5] sm:$0xff]
        %v1238 = vld [vmem:[%s5 + $0x8] sm:$0xff]
        %v1239 = vld [vmem:[%s5 + $0x10] sm:$0xff]
        %v1240 = vld [vmem:[%s5 + $0x18] sm:$0xff]
        %v1241 = vld [vmem:[%s5 + $0x20] sm:$0xff]
        %v1242 = vld [vmem:[%s5 + $0x28] sm:$0xff]
        %v1243 = vld [vmem:[%s5 + $0x30] sm:$0xff]
        %v1244 = vld [vmem:[%s5 + $0x38] sm:$0xff]
        %v1245 = vld [vmem:[%s6] sm:$0x3]
        %v1247 = vperm.slane %v1245, 0
        %v1248 = vperm.slane %v1245, 1
        %v1259 = vunpack.c.l.b16 %v1237
        %v1260 = vunpack.c.h.b16 %v1237
        %v1261 = vunpack.c.l.b16 %v1238
        %v1262 = vunpack.c.h.b16 %v1238
        %v1263 = vunpack.c.l.b16 %v1239
        %v1264 = vunpack.c.h.b16 %v1239
        %v1265 = vunpack.c.l.b16 %v1240
        %v1266 = vunpack.c.h.b16 %v1240
        %v1267 = vunpack.c.l.b16 %v1241
        %v1268 = vunpack.c.h.b16 %v1241
        %v1269 = vunpack.c.l.b16 %v1242
        %v1270 = vunpack.c.h.b16 %v1242
        %v1271 = vunpack.c.l.b16 %v1243
        %v1272 = vunpack.c.h.b16 %v1243
        %v1273 = vunpack.c.l.b16 %v1244
        %v1274 = vunpack.c.h.b16 %v1244
        %v1275 = vpack.c.b16 %v1261, %v1259
        %v1276 = vpack.c.b16 %v1262, %v1260
        %v1277 = vpack.c.b16 %v1265, %v1263
        %v1278 = vpack.c.b16 %v1266, %v1264
        %v1279 = vpack.c.b16 %v1269, %v1267
        %v1280 = vpack.c.b16 %v1270, %v1268
        %v1281 = vpack.c.b16 %v1273, %v1271
        %v1282 = vpack.c.b16 %v1274, %v1272
        %vm1291 = vcmask 523264
        %v1293 = vsel %vm1291, %v1221, 0
        %v1296 = vsel %vm1291, %v1222, 0
        %v1299 = vsel %vm1291, %v1223, 0
        %v1302 = vsel %vm1291, %v1224, 0
        %v1305 = vsel %vm1291, %v1225, 0
        %v1308 = vsel %vm1291, %v1226, 0
        %v1311 = vsel %vm1291, %v1227, 0
        %v1314 = vsel %vm1291, %v1228, 0
        %v1317 = vsel %vm1291, %v1229, 0
        %v1320 = vsel %vm1291, %v1230, 0
        %v1323 = vsel %vm1291, %v1231, 0
        %v1326 = vsel %vm1291, %v1232, 0
        %v1329 = vsel %vm1291, %v1233, 0
        %v1332 = vsel %vm1291, %v1234, 0
        %v1335 = vsel %vm1291, %v1235, 0
        %v1338 = vsel %vm1291, %v1236, 0
        %1340 = vmatpush.bf16.msra.mxu0 0
        %1341 = vmatpush.bf16.msra.mxu0 0
        %1342 = vmatpush.bf16.msra.mxu0 0
        %1343 = vmatpush.bf16.msra.mxu0 0
        %1344 = vmatpush.bf16.msra.mxu0 %v1281
        %1345 = vmatpush.bf16.msra.mxu0 %v1279
        %1346 = vmatpush.bf16.msra.mxu0 %v1277
        %1347 = vmatpush.bf16.msra.mxu0 %v1275
        %1348 = vmatmul.bf16.gmra.mxu0 %v1293
        %v1349 = vpop.f32.mrf.mxu0
        %v1350 = vadd.f32 %v1247, %v1349
        %v1351 = vpop.f32.mrf.mxu0
        %v1352 = vadd.f32 %v1247, %v1351
        %1353 = vmatmul.bf16.gmra.mxu0 %v1296
        %v1354 = vpop.f32.mrf.mxu0
        %v1355 = vadd.f32 %v1247, %v1354
        %v1356 = vpop.f32.mrf.mxu0
        %v1357 = vadd.f32 %v1247, %v1356
        %1358 = vmatmul.bf16.gmra.mxu0 %v1299
        %v1359 = vpop.f32.mrf.mxu0
        %v1360 = vadd.f32 %v1247, %v1359
        %v1361 = vpop.f32.mrf.mxu0
        %v1362 = vadd.f32 %v1247, %v1361
        %1363 = vmatmul.bf16.gmra.mxu0 %v1302
        %v1364 = vpop.f32.mrf.mxu0
        %v1365 = vadd.f32 %v1247, %v1364
        %v1366 = vpop.f32.mrf.mxu0
        %v1367 = vadd.f32 %v1247, %v1366
        %1368 = vmatmul.bf16.gmra.mxu0 %v1305
        %v1369 = vpop.f32.mrf.mxu0
        %v1370 = vadd.f32 %v1247, %v1369
        %v1371 = vpop.f32.mrf.mxu0
        %v1372 = vadd.f32 %v1247, %v1371
        %1373 = vmatmul.bf16.gmra.mxu0 %v1308
        %v1374 = vpop.f32.mrf.mxu0
        %v1375 = vadd.f32 %v1247, %v1374
        %v1376 = vpop.f32.mrf.mxu0
        %v1377 = vadd.f32 %v1247, %v1376
        %1378 = vmatmul.bf16.gmra.mxu0 %v1311
        %v1379 = vpop.f32.mrf.mxu0
        %v1380 = vadd.f32 %v1247, %v1379
        %v1381 = vpop.f32.mrf.mxu0
        %v1382 = vadd.f32 %v1247, %v1381
        %1383 = vmatmul.bf16.gmra.mxu0 %v1314
        %v1384 = vpop.f32.mrf.mxu0
        %v1385 = vadd.f32 %v1247, %v1384
        %v1386 = vpop.f32.mrf.mxu0
        %v1387 = vadd.f32 %v1247, %v1386
        %1388 = vmatmul.bf16.gmra.mxu0 %v1317
        %v1389 = vpop.f32.mrf.mxu0
        %v1390 = vadd.f32 %v1247, %v1389
        %v1391 = vpop.f32.mrf.mxu0
        %v1392 = vadd.f32 %v1247, %v1391
        %1393 = vmatmul.bf16.gmra.mxu0 %v1320
        %v1394 = vpop.f32.mrf.mxu0
        %v1395 = vadd.f32 %v1247, %v1394
        %v1396 = vpop.f32.mrf.mxu0
        %v1397 = vadd.f32 %v1247, %v1396
        %1398 = vmatmul.bf16.gmra.mxu0 %v1323
        %v1399 = vpop.f32.mrf.mxu0
        %v1400 = vadd.f32 %v1247, %v1399
        %v1401 = vpop.f32.mrf.mxu0
        %v1402 = vadd.f32 %v1247, %v1401
        %1403 = vmatmul.bf16.gmra.mxu0 %v1326
        %v1404 = vpop.f32.mrf.mxu0
        %v1405 = vadd.f32 %v1247, %v1404
        %v1406 = vpop.f32.mrf.mxu0
        %v1407 = vadd.f32 %v1247, %v1406
        %1408 = vmatmul.bf16.gmra.mxu0 %v1329
        %v1409 = vpop.f32.mrf.mxu0
        %v1410 = vadd.f32 %v1247, %v1409
        %v1411 = vpop.f32.mrf.mxu0
        %v1412 = vadd.f32 %v1247, %v1411
        %1413 = vmatmul.bf16.gmra.mxu0 %v1332
        %v1414 = vpop.f32.mrf.mxu0
        %v1415 = vadd.f32 %v1247, %v1414
        %v1416 = vpop.f32.mrf.mxu0
        %v1417 = vadd.f32 %v1247, %v1416
        %1418 = vmatmul.bf16.gmra.mxu0 %v1335
        %v1419 = vpop.f32.mrf.mxu0
        %v1420 = vadd.f32 %v1247, %v1419
        %v1421 = vpop.f32.mrf.mxu0
        %v1422 = vadd.f32 %v1247, %v1421
        %1423 = vmatmul.bf16.gmra.mxu0 %v1338
        %v1424 = vpop.f32.mrf.mxu0
        %v1425 = vadd.f32 %v1247, %v1424
        %v1426 = vpop.f32.mrf.mxu0
        %v1427 = vadd.f32 %v1247, %v1426
        %1428 = vdwg.mxu0
        %1429 = vmatpush.bf16.msra.mxu0 0
        %1430 = vmatpush.bf16.msra.mxu0 0
        %1431 = vmatpush.bf16.msra.mxu0 0
        %1432 = vmatpush.bf16.msra.mxu0 0
        %1433 = vmatpush.bf16.msra.mxu0 %v1282
        %1434 = vmatpush.bf16.msra.mxu0 %v1280
        %1435 = vmatpush.bf16.msra.mxu0 %v1278
        %1436 = vmatpush.bf16.msra.mxu0 %v1276
        %1437 = vmatmul.bf16.gmra.mxu0 %v1293
        %v1438 = vpop.f32.mrf.mxu0
        %v1439 = vadd.f32 %v1248, %v1438
        %v1440 = vpop.f32.mrf.mxu0
        %v1441 = vadd.f32 %v1248, %v1440
        %1442 = vmatmul.bf16.gmra.mxu0 %v1296
        %v1443 = vpop.f32.mrf.mxu0
        %v1444 = vadd.f32 %v1248, %v1443
        %v1445 = vpop.f32.mrf.mxu0
        %v1446 = vadd.f32 %v1248, %v1445
        %1447 = vmatmul.bf16.gmra.mxu0 %v1299
        %v1448 = vpop.f32.mrf.mxu0
        %v1449 = vadd.f32 %v1248, %v1448
        %v1450 = vpop.f32.mrf.mxu0
        %v1451 = vadd.f32 %v1248, %v1450
        %1452 = vmatmul.bf16.gmra.mxu0 %v1302
        %v1453 = vpop.f32.mrf.mxu0
        %v1454 = vadd.f32 %v1248, %v1453
        %v1455 = vpop.f32.mrf.mxu0
        %v1456 = vadd.f32 %v1248, %v1455
        %1457 = vmatmul.bf16.gmra.mxu0 %v1305
        %v1458 = vpop.f32.mrf.mxu0
        %v1459 = vadd.f32 %v1248, %v1458
        %v1460 = vpop.f32.mrf.mxu0
        %v1461 = vadd.f32 %v1248, %v1460
        %1462 = vmatmul.bf16.gmra.mxu0 %v1308
        %v1463 = vpop.f32.mrf.mxu0
        %v1464 = vadd.f32 %v1248, %v1463
        %v1465 = vpop.f32.mrf.mxu0
        %v1466 = vadd.f32 %v1248, %v1465
        %1467 = vmatmul.bf16.gmra.mxu0 %v1311
        %v1468 = vpop.f32.mrf.mxu0
        %v1469 = vadd.f32 %v1248, %v1468
        %v1470 = vpop.f32.mrf.mxu0
        %v1471 = vadd.f32 %v1248, %v1470
        %1472 = vmatmul.bf16.gmra.mxu0 %v1314
        %v1473 = vpop.f32.mrf.mxu0
        %v1474 = vadd.f32 %v1248, %v1473
        %v1475 = vpop.f32.mrf.mxu0
        %v1476 = vadd.f32 %v1248, %v1475
        %1477 = vmatmul.bf16.gmra.mxu0 %v1317
        %v1478 = vpop.f32.mrf.mxu0
        %v1479 = vadd.f32 %v1248, %v1478
        %v1480 = vpop.f32.mrf.mxu0
        %v1481 = vadd.f32 %v1248, %v1480
        %1482 = vmatmul.bf16.gmra.mxu0 %v1320
        %v1483 = vpop.f32.mrf.mxu0
        %v1484 = vadd.f32 %v1248, %v1483
        %v1485 = vpop.f32.mrf.mxu0
        %v1486 = vadd.f32 %v1248, %v1485
        %1487 = vmatmul.bf16.gmra.mxu0 %v1323
        %v1488 = vpop.f32.mrf.mxu0
        %v1489 = vadd.f32 %v1248, %v1488
        %v1490 = vpop.f32.mrf.mxu0
        %v1491 = vadd.f32 %v1248, %v1490
        %1492 = vmatmul.bf16.gmra.mxu0 %v1326
        %v1493 = vpop.f32.mrf.mxu0
        %v1494 = vadd.f32 %v1248, %v1493
        %v1495 = vpop.f32.mrf.mxu0
        %v1496 = vadd.f32 %v1248, %v1495
        %1497 = vmatmul.bf16.gmra.mxu0 %v1329
        %v1498 = vpop.f32.mrf.mxu0
        %v1499 = vadd.f32 %v1248, %v1498
        %v1500 = vpop.f32.mrf.mxu0
        %v1501 = vadd.f32 %v1248, %v1500
        %1502 = vmatmul.bf16.gmra.mxu0 %v1332
        %v1503 = vpop.f32.mrf.mxu0
        %v1504 = vadd.f32 %v1248, %v1503
        %v1505 = vpop.f32.mrf.mxu0
        %v1506 = vadd.f32 %v1248, %v1505
        %1507 = vmatmul.bf16.gmra.mxu0 %v1335
        %v1508 = vpop.f32.mrf.mxu0
        %v1509 = vadd.f32 %v1248, %v1508
        %v1510 = vpop.f32.mrf.mxu0
        %v1511 = vadd.f32 %v1248, %v1510
        %1512 = vmatmul.bf16.gmra.mxu0 %v1338
        %v1513 = vpop.f32.mrf.mxu0
        %v1514 = vadd.f32 %v1248, %v1513
        %v1515 = vpop.f32.mrf.mxu0
        %v1516 = vadd.f32 %v1248, %v1515
        %1517 = vdwg.mxu0
        %v1518 = vtanh.pop %v1350
        %v1519 = vtanh.pop %v1439
        %v1520 = vtanh.pop %v1352
        %v1521 = vtanh.pop %v1441
        %v1522 = vtanh.pop %v1355
        %v1523 = vtanh.pop %v1444
        %v1524 = vtanh.pop %v1357
        %v1525 = vtanh.pop %v1446
        %v1526 = vtanh.pop %v1360
        %v1527 = vtanh.pop %v1449
        %v1528 = vtanh.pop %v1362
        %v1529 = vtanh.pop %v1451
        %v1530 = vtanh.pop %v1365
        %v1531 = vtanh.pop %v1454
        %v1532 = vtanh.pop %v1367
        %v1533 = vtanh.pop %v1456
        %v1534 = vtanh.pop %v1370
        %v1535 = vtanh.pop %v1459
        %v1536 = vtanh.pop %v1372
        %v1537 = vtanh.pop %v1461
        %v1538 = vtanh.pop %v1375
        %v1539 = vtanh.pop %v1464
        %v1540 = vtanh.pop %v1377
        %v1541 = vtanh.pop %v1466
        %v1542 = vtanh.pop %v1380
        %v1543 = vtanh.pop %v1469
        %v1544 = vtanh.pop %v1382
        %v1545 = vtanh.pop %v1471
        %v1546 = vtanh.pop %v1385
        %v1547 = vtanh.pop %v1474
        %v1548 = vtanh.pop %v1387
        %v1549 = vtanh.pop %v1476
        %v1550 = vtanh.pop %v1390
        %v1551 = vtanh.pop %v1479
        %v1552 = vtanh.pop %v1392
        %v1553 = vtanh.pop %v1481
        %v1554 = vtanh.pop %v1395
        %v1555 = vtanh.pop %v1484
        %v1556 = vtanh.pop %v1397
        %v1557 = vtanh.pop %v1486
        %v1558 = vtanh.pop %v1400
        %v1559 = vtanh.pop %v1489
        %v1560 = vtanh.pop %v1402
        %v1561 = vtanh.pop %v1491
        %v1562 = vtanh.pop %v1405
        %v1563 = vtanh.pop %v1494
        %v1564 = vtanh.pop %v1407
        %v1565 = vtanh.pop %v1496
        %v1566 = vtanh.pop %v1410
        %v1567 = vtanh.pop %v1499
        %v1568 = vtanh.pop %v1412
        %v1569 = vtanh.pop %v1501
        %v1570 = vtanh.pop %v1415
        %v1571 = vtanh.pop %v1504
        %v1572 = vtanh.pop %v1417
        %v1573 = vtanh.pop %v1506
        %v1574 = vtanh.pop %v1420
        %v1575 = vtanh.pop %v1509
        %v1576 = vtanh.pop %v1422
        %v1577 = vtanh.pop %v1511
        %v1578 = vtanh.pop %v1425
        %v1579 = vtanh.pop %v1514
        %v1580 = vtanh.pop %v1427
        %v1581 = vtanh.pop %v1516
        %1582 = vst [vmem:[%s315] sm:$0xff] %v1518
        %1583 = vst [vmem:[%s315 + $0x8] sm:$0xff] %v1519
        %1584 = vst [vmem:[%s315 + $0x10] sm:$0xff] %v1520
        %1585 = vst [vmem:[%s315 + $0x18] sm:$0xff] %v1521
        %1586 = vst [vmem:[%s315 + $0x20] sm:$0xff] %v1522
        %1587 = vst [vmem:[%s315 + $0x28] sm:$0xff] %v1523
        %1588 = vst [vmem:[%s315 + $0x30] sm:$0xff] %v1524
        %1589 = vst [vmem:[%s315 + $0x38] sm:$0xff] %v1525
        %1590 = vst [vmem:[%s315 + $0x40] sm:$0xff] %v1526
        %1591 = vst [vmem:[%s315 + $0x48] sm:$0xff] %v1527
        %1592 = vst [vmem:[%s315 + $0x50] sm:$0xff] %v1528
        %1593 = vst [vmem:[%s315 + $0x58] sm:$0xff] %v1529
        %1594 = vst [vmem:[%s315 + $0x60] sm:$0xff] %v1530
        %1595 = vst [vmem:[%s315 + $0x68] sm:$0xff] %v1531
        %1596 = vst [vmem:[%s315 + $0x70] sm:$0xff] %v1532
        %1597 = vst [vmem:[%s315 + $0x78] sm:$0xff] %v1533
        %1598 = vst [vmem:[%s315 + $0x80] sm:$0xff] %v1534
        %1599 = vst [vmem:[%s315 + $0x88] sm:$0xff] %v1535
        %1600 = vst [vmem:[%s315 + $0x90] sm:$0xff] %v1536
        %1601 = vst [vmem:[%s315 + $0x98] sm:$0xff] %v1537
        %1602 = vst [vmem:[%s315 + $0xa0] sm:$0xff] %v1538
        %1603 = vst [vmem:[%s315 + $0xa8] sm:$0xff] %v1539
        %1604 = vst [vmem:[%s315 + $0xb0] sm:$0xff] %v1540
        %1605 = vst [vmem:[%s315 + $0xb8] sm:$0xff] %v1541
        %1606 = vst [vmem:[%s315 + $0xc0] sm:$0xff] %v1542
        %1607 = vst [vmem:[%s315 + $0xc8] sm:$0xff] %v1543
        %1608 = vst [vmem:[%s315 + $0xd0] sm:$0xff] %v1544
        %1609 = vst [vmem:[%s315 + $0xd8] sm:$0xff] %v1545
        %1610 = vst [vmem:[%s315 + $0xe0] sm:$0xff] %v1546
        %1611 = vst [vmem:[%s315 + $0xe8] sm:$0xff] %v1547
        %1612 = vst [vmem:[%s315 + $0xf0] sm:$0xff] %v1548
        %1613 = vst [vmem:[%s315 + $0xf8] sm:$0xff] %v1549
        %1614 = vst [vmem:[%s315 + $0x100] sm:$0xff] %v1550
        %1615 = vst [vmem:[%s315 + $0x108] sm:$0xff] %v1551
        %1616 = vst [vmem:[%s315 + $0x110] sm:$0xff] %v1552
        %1617 = vst [vmem:[%s315 + $0x118] sm:$0xff] %v1553
        %1618 = vst [vmem:[%s315 + $0x120] sm:$0xff] %v1554
        %1619 = vst [vmem:[%s315 + $0x128] sm:$0xff] %v1555
        %1620 = vst [vmem:[%s315 + $0x130] sm:$0xff] %v1556
        %1621 = vst [vmem:[%s315 + $0x138] sm:$0xff] %v1557
        %1622 = vst [vmem:[%s315 + $0x140] sm:$0xff] %v1558
        %1623 = vst [vmem:[%s315 + $0x148] sm:$0xff] %v1559
        %1624 = vst [vmem:[%s315 + $0x150] sm:$0xff] %v1560
        %1625 = vst [vmem:[%s315 + $0x158] sm:$0xff] %v1561
        %1626 = vst [vmem:[%s315 + $0x160] sm:$0xff] %v1562
        %1627 = vst [vmem:[%s315 + $0x168] sm:$0xff] %v1563
        %1628 = vst [vmem:[%s315 + $0x170] sm:$0xff] %v1564
        %1629 = vst [vmem:[%s315 + $0x178] sm:$0xff] %v1565
        %1630 = vst [vmem:[%s315 + $0x180] sm:$0xff] %v1566
        %1631 = vst [vmem:[%s315 + $0x188] sm:$0xff] %v1567
        %1632 = vst [vmem:[%s315 + $0x190] sm:$0xff] %v1568
        %1633 = vst [vmem:[%s315 + $0x198] sm:$0xff] %v1569
        %1634 = vst [vmem:[%s315 + $0x1a0] sm:$0xff] %v1570
        %1635 = vst [vmem:[%s315 + $0x1a8] sm:$0xff] %v1571
        %1636 = vst [vmem:[%s315 + $0x1b0] sm:$0xff] %v1572
        %1637 = vst [vmem:[%s315 + $0x1b8] sm:$0xff] %v1573
        %1638 = vst [vmem:[%s315 + $0x1c0] sm:$0xff] %v1574
        %1639 = vst [vmem:[%s315 + $0x1c8] sm:$0xff] %v1575
        %1640 = vst [vmem:[%s315 + $0x1d0] sm:$0xff] %v1576
        %1641 = vst [vmem:[%s315 + $0x1d8] sm:$0xff] %v1577
        %1642 = vst [vmem:[%s315 + $0x1e0] sm:$0xff] %v1578
        %1643 = vst [vmem:[%s315 + $0x1e8] sm:$0xff] %v1579
        %1644 = vst [vmem:[%s315 + $0x1f0] sm:$0xff] %v1580
        %1645 = vst [vmem:[%s315 + $0x1f8] sm:$0xff] %v1581
        %s1646 = sand.u32 %s189, 1
        %s1647 = scalar_lea.sflag [#allocation4], %s1646
        %s1648 = sand.u32 %s189, 1
        %s1649 = smul.addr %s1648, 512
        %s1650 = scalar_lea.vmem [#allocation5], %s1649
        // Predicated region
        $region53: #{tpu_custom_call.1} parent=47 // pred_check
          %p1651 = pneg %p199
        $region54: #{tpu_custom_call.1} parent=47 // pred_check_branch
          %1653 = sbr.rel (%p1651) target = $region56
        $region55: #{tpu_custom_call.1} parent=47 // pred_region
          %s1654 = smul.u32 32, %s24
          %1656 = vsyncadd %s1647, 0
          %s1657 = smul.addr %s1654, 2
          %s1658 = smul.addr %s1657, 8
          %s1659 = scalar_lea.hbm %s7, %s1658
          %s1660 = sshll.u32 %s1650, 4
          %s1661 = int_to_ptr.vmem [resolvable:$true] %s1660
          %s1662 = sshll.u32 %s1659, 4
          %s1663 = int_to_ptr.hbm [resolvable:$true] %s1662
          %1668 = dma.vmem_to_hbm [thread:$0]  %s1661, 8192, %s1663, %s1647, 256, 256, 16
        $region56: #{tpu_custom_call.1} parent=47 // pred_fallthru
          _
      $region48: #{tpu_custom_call.1} parent=5 // pred_fallthru
        _
      %p1669 = scmp.le.s32.totalorder 2, %s19
      // Predicated region
      $region57: #{tpu_custom_call.1} parent=5 // pred_check
        %p1670 = pneg %p1669
      $region58: #{tpu_custom_call.1} parent=5 // pred_check_branch
        %1672 = sbr.rel (%p1670) target = $region60
      $region59: #{tpu_custom_call.1} parent=5 // pred_region
        %s1673 = ssub.s32 %s19, 2
        // Predicated region
        $region61: #{tpu_custom_call.1} parent=59 // pred_check
          %p1674 = pneg %p205
        $region62: #{tpu_custom_call.1} parent=59 // pred_check_branch
          %1676 = sbr.rel (%p1674) target = $region64
        $region63: #{tpu_custom_call.1} parent=59 // pred_region
          %s1677 = sand.u32 %s190, 1
          %s1678 = scalar_lea.sflag [#allocation4], %s1677
          %s1679 = sand.u32 %s190, 1
          %s1680 = smul.addr %s1679, 512
          %s1681 = scalar_lea.vmem [#allocation5], %s1680
          %1683 = dma.done %s1678, 8192
        $region64: #{tpu_custom_call.1} parent=59 // pred_fallthru
          _
      $region60: #{tpu_custom_call.1} parent=5 // pred_fallthru
        _
    $region6: #{tpu_custom_call.1} parent=1 // loop_footer
      %s23 = sadd.s32 1, %s19
    $region7: #{tpu_custom_call.1} parent=1 // loop_footer_branch
      %18 = sbr.rel target = $region3
    $region8: #{tpu_custom_call.1} parent=1 // loop_exit
      _
    %1684 = vsyncpa [#allocation3], 1
    %s1685 = scalar_lea.sflag [#allocation3], 1
    %1686 = vsyncpa %s1685, 1
    %1687 = vsyncpa [#allocation4], 1
    %s1688 = scalar_lea.sflag [#allocation4], 1
    %1689 = vsyncpa %s1688, 1

</llo_original>
